<compile_context>
chip_gen: v5e
topology: v5e:2x2
jax: 0.10.0
libtpu: 0.0.40
codegen_flags: <defaults>
</compile_context>

<pallas_src>
import math
import functools

import jax
import jax.numpy as jnp
from jax import lax
from jax.experimental import pallas as pl
from jax.experimental.pallas import tpu as pltpu


# ----------------------------------------------------------------------------
# Fused kernel: c_attn + multi-head causal attention + c_proj, one batch element
# per grid step.
# ----------------------------------------------------------------------------
def fused_csa_kernel(x_ref, wa_ref, ba_ref, wp_ref, bp_ref, o_ref, qkv_scr,
                     *, n_head, head_dim):
    # x_ref : (T, C)      wa_ref: (C, 3C)   ba_ref: (1, 3C)
    # wp_ref: (C, C)      bp_ref: (1, C)    o_ref : (T, C)
    # qkv_scr: VMEM (T, 3C) f32 scratch
    T = x_ref.shape[0]
    C = n_head * head_dim
    scale = 1.0 / math.sqrt(head_dim)

    # ---- c_attn: (T, C) @ (C, 3C) + bias; bf16 MXU operands, f32 accumulation.
    qkv_scr[...] = (
        jnp.dot(
            x_ref[...].astype(jnp.bfloat16),
            wa_ref[...].astype(jnp.bfloat16),
            preferred_element_type=jnp.float32,
        )
        + ba_ref[...]
    )

    # ---- causal mask, built once and reused across heads
    row = lax.broadcasted_iota(jnp.int32, (T, T), 0)
    col = lax.broadcasted_iota(jnp.int32, (T, T), 1)
    causal = col <= row

    outs = []
    for h in range(n_head):  # static head loop keeps MXU pushes back-to-back
        q = qkv_scr[:, h * head_dim:(h + 1) * head_dim]               # (T, hd)
        k = qkv_scr[:, C + h * head_dim:C + (h + 1) * head_dim]       # (T, hd)
        v = qkv_scr[:, 2 * C + h * head_dim:2 * C + (h + 1) * head_dim]

        # fold 1/sqrt(hd) into q (T*hd muls instead of T*T), bf16 MXU operands
        qs = (q * scale).astype(jnp.bfloat16)

        # scores: contract last dim of both operands -> no explicit k.T relayout
        s = lax.dot_general(
            qs, k.astype(jnp.bfloat16),
            dimension_numbers=(((1,), (1,)), ((), ())),
            preferred_element_type=jnp.float32,
        )                                                             # (T, T) f32

        s = jnp.where(causal, s, -1e30)

        # numerically stable softmax in f32 (VPU/EUP)
        m = jnp.max(s, axis=-1, keepdims=True)
        p = jnp.exp(s - m)
        l = jnp.sum(p, axis=-1, keepdims=True)
        p = p * pl.reciprocal(l, approx=True)                         # EUP vrcp

        outs.append(
            jnp.dot(p.astype(jnp.bfloat16), v.astype(jnp.bfloat16),
                    preferred_element_type=jnp.float32)               # (T, hd)
        )

    # heads merged in order -> lane-dense (T, C) operand for c_proj
    y = jnp.concatenate(outs, axis=-1).astype(jnp.bfloat16)

    # ---- c_proj: (T, C) @ (C, C) + bias; single lane-dense (T, C) store
    o_ref[...] = (
        jnp.dot(y, wp_ref[...].astype(jnp.bfloat16),
                preferred_element_type=jnp.float32)
        + bp_ref[...]
    ).astype(o_ref.dtype)


# ----------------------------------------------------------------------------
# Module-level forward: CasualSelfAttention (eval mode)
# ----------------------------------------------------------------------------
def casual_self_attention(x, params, n_head):
    """x: (B, T, C) float32 -> (B, T, C)."""
    B, T, C = x.shape
    hd = C // n_head
    kernel = functools.partial(fused_csa_kernel, n_head=n_head, head_dim=hd)

    return pl.pallas_call(
        kernel,
        out_shape=jax.ShapeDtypeStruct((B, T, C), x.dtype),
        grid=(B,),
        in_specs=[
            pl.BlockSpec((pl.Squeezed(), T, C), lambda b: (b, 0, 0)),   # x
            pl.BlockSpec((C, 3 * C), lambda b: (0, 0)),                 # w_attn (resident)
            pl.BlockSpec((1, 3 * C), lambda b: (0, 0)),                 # b_attn
            pl.BlockSpec((C, C), lambda b: (0, 0)),                     # w_proj (resident)
            pl.BlockSpec((1, C), lambda b: (0, 0)),                     # b_proj
        ],
        out_specs=pl.BlockSpec((pl.Squeezed(), T, C), lambda b: (b, 0, 0)),
        scratch_shapes=[pltpu.VMEM((T, 3 * C), jnp.float32)],           # qkv scratch
        compiler_params=pltpu.CompilerParams(dimension_semantics=("parallel",)),
    )(
        x,
        params["w_attn"], params["b_attn"].reshape(1, 3 * C),
        params["w_proj"], params["b_proj"].reshape(1, C),
    )


# ----------------------------------------------------------------------------
# Reference implementation (pure JAX, f32) for sanity checking
# ----------------------------------------------------------------------------
def reference(x, params, n_head):
    B, T, C = x.shape
    hd = C // n_head
    qkv = x @ params["w_attn"] + params["b_attn"]
    q, k, v = jnp.split(qkv, 3, axis=2)
    q = q.reshape(B, T, n_head, hd).transpose(0, 2, 1, 3)
    k = k.reshape(B, T, n_head, hd).transpose(0, 2, 1, 3)
    v = v.reshape(B, T, n_head, hd).transpose(0, 2, 1, 3)
    s = jnp.einsum("bhqd,bhkd->bhqk", q, k) / math.sqrt(hd)
    mask = jnp.tril(jnp.ones((T, T), dtype=bool))
    s = jnp.where(mask, s, -jnp.inf)
    p = jax.nn.softmax(s, axis=-1)
    y = jnp.einsum("bhqk,bhkd->bhqd", p, v)
    y = y.transpose(0, 2, 1, 3).reshape(B, T, C)
    return y @ params["w_proj"] + params["b_proj"]


if __name__ == "__main__":
    # Small GPT-2-like config
    B, T, C, n_head = 2, 128, 128, 4
    assert C % n_head == 0

    key = jax.random.PRNGKey(0)
    kx, k1, k2, k3, k4 = jax.random.split(key, 5)

    x = jax.random.normal(kx, (B, T, C), dtype=jnp.float32)

    # Parameters stored as (in, out) so forward is x @ W + b
    params = {
        "w_attn": 0.02 * jax.random.normal(k1, (C, 3 * C), dtype=jnp.float32),
        "b_attn": 0.02 * jax.random.normal(k2, (3 * C,), dtype=jnp.float32),
        "w_proj": 0.02 * jax.random.normal(k3, (C, C), dtype=jnp.float32),
        "b_proj": 0.02 * jax.random.normal(k4, (C,), dtype=jnp.float32),
    }

    fwd = jax.jit(functools.partial(casual_self_attention, n_head=n_head))
    y = fwd(x, params)
    jax.block_until_ready(y)

    y_ref = reference(x, params, n_head)
    assert y.shape == (B, T, C)
    # bf16 MXU operands (f32 accumulation) -> relaxed tolerance vs the f32 reference
    assert jnp.allclose(y, y_ref, atol=2e-2, rtol=2e-2), "mismatch vs reference"

    print("KERNEL_OK")
</pallas_src>

<mosaic_0001>
module attributes {stable_mosaic.version = 11 : i64} {
  func.func @fused_csa_kernel(%arg0: i32, %arg1: memref<1x128x128xf32, #tpu.memory_space<vmem>>, %arg2: memref<128x384xf32, #tpu.memory_space<vmem>>, %arg3: memref<1x384xf32, #tpu.memory_space<vmem>>, %arg4: memref<128x128xf32, #tpu.memory_space<vmem>>, %arg5: memref<1x128xf32, #tpu.memory_space<vmem>>, %arg6: memref<1x128x128xf32, #tpu.memory_space<vmem>>, %arg7: memref<128x384xf32, #tpu.memory_space<vmem>>) attributes {dimension_semantics = [#tpu.dimension_semantics<parallel>], iteration_bounds = array<i64: 2>, scalar_prefetch = 0 : i64, scratch_operands = 1 : i64, tpu.core_type = #tpu.core_type<tc>, window_params = [{transform_indices = @transform_0, window_bounds = array<i64: 1, 128, 128>}, {pipeline_mode = #tpu.pipeline_mode<synchronous>, transform_indices = @transform_1, window_bounds = array<i64: 128, 384>}, {pipeline_mode = #tpu.pipeline_mode<synchronous>, transform_indices = @transform_2, window_bounds = array<i64: 1, 384>}, {pipeline_mode = #tpu.pipeline_mode<synchronous>, transform_indices = @transform_3, window_bounds = array<i64: 128, 128>}, {pipeline_mode = #tpu.pipeline_mode<synchronous>, transform_indices = @transform_4, window_bounds = array<i64: 1, 128>}, {transform_indices = @transform_5, window_bounds = array<i64: 1, 128, 128>}]} {
    %c0 = arith.constant 0 : index
    %c0_0 = arith.constant 0 : index
    %c0_1 = arith.constant 0 : index
    %0 = vector.load %arg1[%c0, %c0_0, %c0_1] : memref<1x128x128xf32, #tpu.memory_space<vmem>>, vector<1x128x128xf32>
    %1 = vector.shape_cast %0 : vector<1x128x128xf32> to vector<128x128xf32>
    %2 = arith.truncf %1 : vector<128x128xf32> to vector<128x128xbf16>
    %c0_2 = arith.constant 0 : index
    %c0_3 = arith.constant 0 : index
    %3 = vector.load %arg2[%c0_2, %c0_3] : memref<128x384xf32, #tpu.memory_space<vmem>>, vector<128x384xf32>
    %4 = arith.truncf %3 : vector<128x384xf32> to vector<128x384xbf16>
    %cst = arith.constant dense<0.000000e+00> : vector<128x384xf32>
    %5 = tpu.matmul %2, %4, %cst {dimension_numbers = #tpu.dot_dimension_numbers<[1], [0], [0], [1], [0, 0, 1, 1], [], []>} : vector<128x128xbf16>, vector<128x384xbf16>, vector<128x384xf32> -> vector<128x384xf32>
    %c0_4 = arith.constant 0 : index
    %c0_5 = arith.constant 0 : index
    %6 = vector.load %arg3[%c0_4, %c0_5] : memref<1x384xf32, #tpu.memory_space<vmem>>, vector<1x384xf32>
    %7 = vector.broadcast %6 : vector<1x384xf32> to vector<128x384xf32>
    %8 = arith.addf %5, %7 : vector<128x384xf32>
    %c0_6 = arith.constant 0 : index
    %c0_7 = arith.constant 0 : index
    %9 = vector.load %arg7[%c0_6, %c0_7] : memref<128x384xf32, #tpu.memory_space<vmem>>, vector<128x384xf32>
    tpu.vector_store %arg7[%c0_6, %c0_7], %8 {strides = array<i32>} : memref<128x384xf32, #tpu.memory_space<vmem>>, vector<128x384xf32>,
    %10 = tpu.iota {dimensions = array<i32: 0>} : vector<128x128xi32>
    %11 = tpu.iota {dimensions = array<i32: 1>} : vector<128x128xi32>
    %12 = arith.cmpi sle, %11, %10 : vector<128x128xi32>
    %c0_8 = arith.constant 0 : index
    %c0_9 = arith.constant 0 : index
    %13 = vector.load %arg7[%c0_8, %c0_9] : memref<128x384xf32, #tpu.memory_space<vmem>>, vector<128x32xf32>
    %c0_10 = arith.constant 0 : index
    %c128 = arith.constant 128 : index
    %14 = vector.load %arg7[%c0_10, %c128] : memref<128x384xf32, #tpu.memory_space<vmem>>, vector<128x32xf32>
    %c0_11 = arith.constant 0 : index
    %c256 = arith.constant 256 : index
    %15 = vector.load %arg7[%c0_11, %c256] : memref<128x384xf32, #tpu.memory_space<vmem>>, vector<128x32xf32>
    %cst_12 = arith.constant 0.176776692 : f32
    %16 = vector.broadcast %cst_12 : f32 to vector<128x32xf32>
    %17 = arith.mulf %13, %16 : vector<128x32xf32>
    %18 = arith.truncf %17 : vector<128x32xf32> to vector<128x32xbf16>
    %19 = arith.truncf %14 : vector<128x32xf32> to vector<128x32xbf16>
    %cst_13 = arith.constant dense<0.000000e+00> : vector<128x128xf32>
    %20 = tpu.matmul %18, %19, %cst_13 {dimension_numbers = #tpu.dot_dimension_numbers<[1], [1], [0], [0], [0, 0, 1, 0], [], []>} : vector<128x32xbf16>, vector<128x32xbf16>, vector<128x128xf32> -> vector<128x128xf32>
    %cst_14 = arith.constant -1.000000e+30 : f32
    %21 = vector.broadcast %cst_14 : f32 to vector<128x128xf32>
    %22 = arith.select %12, %20, %21 : vector<128x128xi1>, vector<128x128xf32>
    %cst_15 = arith.constant dense<0xFF800000> : vector<128xf32>
    %23 = vector.multi_reduction <maximumf>, %22, %cst_15 [1] : vector<128x128xf32> to vector<128xf32>
    %24 = vector.shape_cast %23 : vector<128xf32> to vector<128x1xf32>
    %25 = vector.broadcast %24 : vector<128x1xf32> to vector<128x128xf32>
    %26 = arith.subf %22, %25 : vector<128x128xf32>
    %27 = math.exp %26 : vector<128x128xf32>
    %cst_16 = arith.constant dense<0.000000e+00> : vector<128xf32>
    %28 = vector.multi_reduction <add>, %27, %cst_16 [1] : vector<128x128xf32> to vector<128xf32>
    %29 = vector.shape_cast %28 : vector<128xf32> to vector<128x1xf32>
    %30 = tpu.reciprocal %29 {approx = true} : vector<128x1xf32> -> vector<128x1xf32>
    %31 = vector.broadcast %30 : vector<128x1xf32> to vector<128x128xf32>
    %32 = arith.mulf %27, %31 : vector<128x128xf32>
    %33 = arith.truncf %32 : vector<128x128xf32> to vector<128x128xbf16>
    %34 = arith.truncf %15 : vector<128x32xf32> to vector<128x32xbf16>
    %cst_17 = arith.constant dense<0.000000e+00> : vector<128x32xf32>
    %35 = tpu.matmul %33, %34, %cst_17 {dimension_numbers = #tpu.dot_dimension_numbers<[1], [0], [0], [1], [0, 0, 1, 1], [], []>} : vector<128x128xbf16>, vector<128x32xbf16>, vector<128x32xf32> -> vector<128x32xf32>
    %c0_18 = arith.constant 0 : index
    %c32 = arith.constant 32 : index
    %36 = vector.load %arg7[%c0_18, %c32] : memref<128x384xf32, #tpu.memory_space<vmem>>, vector<128x32xf32>
    %c0_19 = arith.constant 0 : index
    %c160 = arith.constant 160 : index
    %37 = vector.load %arg7[%c0_19, %c160] : memref<128x384xf32, #tpu.memory_space<vmem>>, vector<128x32xf32>
    %c0_20 = arith.constant 0 : index
    %c288 = arith.constant 288 : index
    %38 = vector.load %arg7[%c0_20, %c288] : memref<128x384xf32, #tpu.memory_space<vmem>>, vector<128x32xf32>
    %cst_21 = arith.constant 0.176776692 : f32
    %39 = vector.broadcast %cst_21 : f32 to vector<128x32xf32>
    %40 = arith.mulf %36, %39 : vector<128x32xf32>
    %41 = arith.truncf %40 : vector<128x32xf32> to vector<128x32xbf16>
    %42 = arith.truncf %37 : vector<128x32xf32> to vector<128x32xbf16>
    %cst_22 = arith.constant dense<0.000000e+00> : vector<128x128xf32>
    %43 = tpu.matmul %41, %42, %cst_22 {dimension_numbers = #tpu.dot_dimension_numbers<[1], [1], [0], [0], [0, 0, 1, 0], [], []>} : vector<128x32xbf16>, vector<128x32xbf16>, vector<128x128xf32> -> vector<128x128xf32>
    %cst_23 = arith.constant -1.000000e+30 : f32
    %44 = vector.broadcast %cst_23 : f32 to vector<128x128xf32>
    %45 = arith.select %12, %43, %44 : vector<128x128xi1>, vector<128x128xf32>
    %cst_24 = arith.constant dense<0xFF800000> : vector<128xf32>
    %46 = vector.multi_reduction <maximumf>, %45, %cst_24 [1] : vector<128x128xf32> to vector<128xf32>
    %47 = vector.shape_cast %46 : vector<128xf32> to vector<128x1xf32>
    %48 = vector.broadcast %47 : vector<128x1xf32> to vector<128x128xf32>
    %49 = arith.subf %45, %48 : vector<128x128xf32>
    %50 = math.exp %49 : vector<128x128xf32>
    %cst_25 = arith.constant dense<0.000000e+00> : vector<128xf32>
    %51 = vector.multi_reduction <add>, %50, %cst_25 [1] : vector<128x128xf32> to vector<128xf32>
    %52 = vector.shape_cast %51 : vector<128xf32> to vector<128x1xf32>
    %53 = tpu.reciprocal %52 {approx = true} : vector<128x1xf32> -> vector<128x1xf32>
    %54 = vector.broadcast %53 : vector<128x1xf32> to vector<128x128xf32>
    %55 = arith.mulf %50, %54 : vector<128x128xf32>
    %56 = arith.truncf %55 : vector<128x128xf32> to vector<128x128xbf16>
    %57 = arith.truncf %38 : vector<128x32xf32> to vector<128x32xbf16>
    %cst_26 = arith.constant dense<0.000000e+00> : vector<128x32xf32>
    %58 = tpu.matmul %56, %57, %cst_26 {dimension_numbers = #tpu.dot_dimension_numbers<[1], [0], [0], [1], [0, 0, 1, 1], [], []>} : vector<128x128xbf16>, vector<128x32xbf16>, vector<128x32xf32> -> vector<128x32xf32>
    %c0_27 = arith.constant 0 : index
    %c64 = arith.constant 64 : index
    %59 = vector.load %arg7[%c0_27, %c64] : memref<128x384xf32, #tpu.memory_space<vmem>>, vector<128x32xf32>
    %c0_28 = arith.constant 0 : index
    %c192 = arith.constant 192 : index
    %60 = vector.load %arg7[%c0_28, %c192] : memref<128x384xf32, #tpu.memory_space<vmem>>, vector<128x32xf32>
    %c0_29 = arith.constant 0 : index
    %c320 = arith.constant 320 : index
    %61 = vector.load %arg7[%c0_29, %c320] : memref<128x384xf32, #tpu.memory_space<vmem>>, vector<128x32xf32>
    %cst_30 = arith.constant 0.176776692 : f32
    %62 = vector.broadcast %cst_30 : f32 to vector<128x32xf32>
    %63 = arith.mulf %59, %62 : vector<128x32xf32>
    %64 = arith.truncf %63 : vector<128x32xf32> to vector<128x32xbf16>
    %65 = arith.truncf %60 : vector<128x32xf32> to vector<128x32xbf16>
    %cst_31 = arith.constant dense<0.000000e+00> : vector<128x128xf32>
    %66 = tpu.matmul %64, %65, %cst_31 {dimension_numbers = #tpu.dot_dimension_numbers<[1], [1], [0], [0], [0, 0, 1, 0], [], []>} : vector<128x32xbf16>, vector<128x32xbf16>, vector<128x128xf32> -> vector<128x128xf32>
    %cst_32 = arith.constant -1.000000e+30 : f32
    %67 = vector.broadcast %cst_32 : f32 to vector<128x128xf32>
    %68 = arith.select %12, %66, %67 : vector<128x128xi1>, vector<128x128xf32>
    %cst_33 = arith.constant dense<0xFF800000> : vector<128xf32>
    %69 = vector.multi_reduction <maximumf>, %68, %cst_33 [1] : vector<128x128xf32> to vector<128xf32>
    %70 = vector.shape_cast %69 : vector<128xf32> to vector<128x1xf32>
    %71 = vector.broadcast %70 : vector<128x1xf32> to vector<128x128xf32>
    %72 = arith.subf %68, %71 : vector<128x128xf32>
    %73 = math.exp %72 : vector<128x128xf32>
    %cst_34 = arith.constant dense<0.000000e+00> : vector<128xf32>
    %74 = vector.multi_reduction <add>, %73, %cst_34 [1] : vector<128x128xf32> to vector<128xf32>
    %75 = vector.shape_cast %74 : vector<128xf32> to vector<128x1xf32>
    %76 = tpu.reciprocal %75 {approx = true} : vector<128x1xf32> -> vector<128x1xf32>
    %77 = vector.broadcast %76 : vector<128x1xf32> to vector<128x128xf32>
    %78 = arith.mulf %73, %77 : vector<128x128xf32>
    %79 = arith.truncf %78 : vector<128x128xf32> to vector<128x128xbf16>
    %80 = arith.truncf %61 : vector<128x32xf32> to vector<128x32xbf16>
    %cst_35 = arith.constant dense<0.000000e+00> : vector<128x32xf32>
    %81 = tpu.matmul %79, %80, %cst_35 {dimension_numbers = #tpu.dot_dimension_numbers<[1], [0], [0], [1], [0, 0, 1, 1], [], []>} : vector<128x128xbf16>, vector<128x32xbf16>, vector<128x32xf32> -> vector<128x32xf32>
    %c0_36 = arith.constant 0 : index
    %c96 = arith.constant 96 : index
    %82 = vector.load %arg7[%c0_36, %c96] : memref<128x384xf32, #tpu.memory_space<vmem>>, vector<128x32xf32>
    %c0_37 = arith.constant 0 : index
    %c224 = arith.constant 224 : index
    %83 = vector.load %arg7[%c0_37, %c224] : memref<128x384xf32, #tpu.memory_space<vmem>>, vector<128x32xf32>
    %c0_38 = arith.constant 0 : index
    %c352 = arith.constant 352 : index
    %84 = vector.load %arg7[%c0_38, %c352] : memref<128x384xf32, #tpu.memory_space<vmem>>, vector<128x32xf32>
    %cst_39 = arith.constant 0.176776692 : f32
    %85 = vector.broadcast %cst_39 : f32 to vector<128x32xf32>
    %86 = arith.mulf %82, %85 : vector<128x32xf32>
    %87 = arith.truncf %86 : vector<128x32xf32> to vector<128x32xbf16>
    %88 = arith.truncf %83 : vector<128x32xf32> to vector<128x32xbf16>
    %cst_40 = arith.constant dense<0.000000e+00> : vector<128x128xf32>
    %89 = tpu.matmul %87, %88, %cst_40 {dimension_numbers = #tpu.dot_dimension_numbers<[1], [1], [0], [0], [0, 0, 1, 0], [], []>} : vector<128x32xbf16>, vector<128x32xbf16>, vector<128x128xf32> -> vector<128x128xf32>
    %cst_41 = arith.constant -1.000000e+30 : f32
    %90 = vector.broadcast %cst_41 : f32 to vector<128x128xf32>
    %91 = arith.select %12, %89, %90 : vector<128x128xi1>, vector<128x128xf32>
    %cst_42 = arith.constant dense<0xFF800000> : vector<128xf32>
    %92 = vector.multi_reduction <maximumf>, %91, %cst_42 [1] : vector<128x128xf32> to vector<128xf32>
    %93 = vector.shape_cast %92 : vector<128xf32> to vector<128x1xf32>
    %94 = vector.broadcast %93 : vector<128x1xf32> to vector<128x128xf32>
    %95 = arith.subf %91, %94 : vector<128x128xf32>
    %96 = math.exp %95 : vector<128x128xf32>
    %cst_43 = arith.constant dense<0.000000e+00> : vector<128xf32>
    %97 = vector.multi_reduction <add>, %96, %cst_43 [1] : vector<128x128xf32> to vector<128xf32>
    %98 = vector.shape_cast %97 : vector<128xf32> to vector<128x1xf32>
    %99 = tpu.reciprocal %98 {approx = true} : vector<128x1xf32> -> vector<128x1xf32>
    %100 = vector.broadcast %99 : vector<128x1xf32> to vector<128x128xf32>
    %101 = arith.mulf %96, %100 : vector<128x128xf32>
    %102 = arith.truncf %101 : vector<128x128xf32> to vector<128x128xbf16>
    %103 = arith.truncf %84 : vector<128x32xf32> to vector<128x32xbf16>
    %cst_44 = arith.constant dense<0.000000e+00> : vector<128x32xf32>
    %104 = tpu.matmul %102, %103, %cst_44 {dimension_numbers = #tpu.dot_dimension_numbers<[1], [0], [0], [1], [0, 0, 1, 1], [], []>} : vector<128x128xbf16>, vector<128x32xbf16>, vector<128x32xf32> -> vector<128x32xf32>
    %105 = tpu.concatenate %35, %58, %81, %104 in 1 : vector<128x32xf32>, vector<128x32xf32>, vector<128x32xf32>, vector<128x32xf32> -> vector<128x128xf32>
    %106 = arith.truncf %105 : vector<128x128xf32> to vector<128x128xbf16>
    %c0_45 = arith.constant 0 : index
    %c0_46 = arith.constant 0 : index
    %107 = vector.load %arg4[%c0_45, %c0_46] : memref<128x128xf32, #tpu.memory_space<vmem>>, vector<128x128xf32>
    %108 = arith.truncf %107 : vector<128x128xf32> to vector<128x128xbf16>
    %cst_47 = arith.constant dense<0.000000e+00> : vector<128x128xf32>
    %109 = tpu.matmul %106, %108, %cst_47 {dimension_numbers = #tpu.dot_dimension_numbers<[1], [0], [0], [1], [0, 0, 1, 1], [], []>} : vector<128x128xbf16>, vector<128x128xbf16>, vector<128x128xf32> -> vector<128x128xf32>
    %c0_48 = arith.constant 0 : index
    %c0_49 = arith.constant 0 : index
    %110 = vector.load %arg5[%c0_48, %c0_49] : memref<1x128xf32, #tpu.memory_space<vmem>>, vector<1x128xf32>
    %111 = vector.broadcast %110 : vector<1x128xf32> to vector<128x128xf32>
    %112 = arith.addf %109, %111 : vector<128x128xf32>
    %c0_50 = arith.constant 0 : index
    %c0_51 = arith.constant 0 : index
    %c0_52 = arith.constant 0 : index
    %113 = vector.load %arg6[%c0_50, %c0_51, %c0_52] : memref<1x128x128xf32, #tpu.memory_space<vmem>>, vector<1x128x128xf32>
    %114 = vector.shape_cast %113 : vector<1x128x128xf32> to vector<128x128xf32>
    %115 = vector.shape_cast %112 : vector<128x128xf32> to vector<1x128x128xf32>
    tpu.vector_store %arg6[%c0_50, %c0_51, %c0_52], %115 {strides = array<i32>} : memref<1x128x128xf32, #tpu.memory_space<vmem>>, vector<1x128x128xf32>,
    return
  }
  func.func @transform_0(%arg0: i32) -> (i32, i32, i32) {
    %c0_i32 = arith.constant 0 : i32
    %c0_i32_0 = arith.constant 0 : i32
    %c0_i32_1 = arith.constant 0 : i32
    return %arg0, %c0_i32, %c0_i32_0 : i32, i32, i32
  }
  func.func @transform_1(%arg0: i32) -> (i32, i32) {
    %c0_i32 = arith.constant 0 : i32
    %c0_i32_0 = arith.constant 0 : i32
    %c0_i32_1 = arith.constant 0 : i32
    return %c0_i32, %c0_i32_0 : i32, i32
  }
  func.func @transform_2(%arg0: i32) -> (i32, i32) {
    %c0_i32 = arith.constant 0 : i32
    %c0_i32_0 = arith.constant 0 : i32
    %c0_i32_1 = arith.constant 0 : i32
    return %c0_i32, %c0_i32_0 : i32, i32
  }
  func.func @transform_3(%arg0: i32) -> (i32, i32) {
    %c0_i32 = arith.constant 0 : i32
    %c0_i32_0 = arith.constant 0 : i32
    %c0_i32_1 = arith.constant 0 : i32
    return %c0_i32, %c0_i32_0 : i32, i32
  }
  func.func @transform_4(%arg0: i32) -> (i32, i32) {
    %c0_i32 = arith.constant 0 : i32
    %c0_i32_0 = arith.constant 0 : i32
    %c0_i32_1 = arith.constant 0 : i32
    return %c0_i32, %c0_i32_0 : i32, i32
  }
  func.func @transform_5(%arg0: i32) -> (i32, i32, i32) {
    %c0_i32 = arith.constant 0 : i32
    %c0_i32_0 = arith.constant 0 : i32
    %c0_i32_1 = arith.constant 0 : i32
    return %arg0, %c0_i32, %c0_i32_0 : i32, i32, i32
  }
}

</mosaic_0001>

<llo_original>
// kernel: casual_self_attention.1
$region0: #{casual_self_attention.1}
  #allocation0 [shape = 'u32[]', space=smem, size = 0x4, offset = 0x4, fixed_abs, tag = 'smem constant byte address 0x4 - core index']
  #allocation1 [shape = 'u32[72,128]{1,0:T(1,128)}', space=vmem, size = 0x9000, scoped, tag = 'internal scratch']
  #allocation2 [shape = 'f32[128,384]{1,0:T(8,128)}', space=vmem, size = 0x30000, scoped, tag = 'scratch operand']
  %s0 = inlined_call_operand.hbm [shape: f32[2,128,128], index: 0, kind: input, shape index: {}]
  %s1 = inlined_call_operand.hbm [shape: f32[128,384], index: 1, kind: input, shape index: {}]
  %s2 = inlined_call_operand.vmem [shape: f32[1,384], index: 2, kind: input, shape index: {}]
  %s3 = inlined_call_operand.hbm [shape: f32[128,128], index: 3, kind: input, shape index: {}]
  %s4 = inlined_call_operand.vmem [shape: f32[1,128], index: 4, kind: input, shape index: {}]
  %s5 = inlined_call_operand.hbm [shape: f32[2,128,128], index: 5, kind: output, shape index: {}]
  %s6 = sld [smem:[#allocation0]]
  $region65: #{casual_self_attention.1} parent=0
    _
  %s8 = ssub.s32 1, %s6
  %s9 = scalar_select 0, %s8, %s6
  $region1: #{casual_self_attention.1} parent=0
    #allocation3 [shape = 'u8[131072]{0}', space=vmem, size = 0x20000, scoped, tag = 'input window, operand 0']
    #allocation4 [shape = 's32[2]{0}', space=sflag, size = 0x8, scoped, tag = 'scoped memory for casual_self_attention.1']
    #allocation5 [shape = 's32[2]{0}', space=sflag, size = 0x8, scoped, tag = 'scoped memory for casual_self_attention.1']
    #allocation6 [shape = 'u8[196608]{0}', space=vmem, size = 0x30000, scoped, tag = 'input window, operand 1, single buffered']
    #allocation7 [shape = 's32[1]{0}', space=sflag, size = 0x4, scoped, tag = 'scoped memory for casual_self_attention.1']
    #allocation8 [shape = 'u8[65536]{0}', space=vmem, size = 0x10000, scoped, tag = 'input window, operand 3, single buffered']
    #allocation9 [shape = 'u8[131072]{0}', space=vmem, size = 0x20000, scoped, tag = 'output window, operand 0']
    %10 = vsyncpa [#allocation4], 0
    %s11 = scalar_lea.sflag [#allocation4], 1
    %12 = vsyncpa %s11, 0
    %13 = vsyncpa [#allocation7], 0
    %14 = vsyncpa [#allocation5], 0
    %s15 = scalar_lea.sflag [#allocation5], 1
    %16 = vsyncpa %s15, 0
    loop: start=0, step=1, limit=4
    $region2: #{casual_self_attention.1} parent=1 // loop_pre_header
      _
    $region3: #{casual_self_attention.1} parent=1 // loop_header
      %s18 = sphi 0, %s22
      %p19 = scmp.ge.s32.totalorder %s18, 4
      %s28 = sphi 0, %s30
      %s31 = sphi 0, %s28
      %s32 = sphi 0, %s31
      %s48 = sphi 0, %s32
      %s52 = sphi 0, %s52
      %s54 = sphi 0, %s52
      %s55 = sphi 0, %s54
      %s69 = sphi 0, %s55
      %s73 = sphi 0, %s73
      %s75 = sphi 0, %s73
      %s76 = sphi 0, %s75
      %s90 = sphi 0, %s76
      %s94 = sphi 0, %s94
      %s96 = sphi 0, %s94
      %s97 = sphi 0, %s96
      %s111 = sphi 0, %s97
      %s115 = sphi 0, %s115
      %s117 = sphi 0, %s115
      %s118 = sphi 0, %s117
      %s132 = sphi 0, %s118
      %s138 = sphi 0, %s140
      %s141 = sphi 0, %s138
      %s142 = sphi 0, %s141
      %s158 = sphi 0, %s142
    $region4: #{casual_self_attention.1} parent=1 // loop_header_branch
      %21 = sbr.rel (%p19) target = $region8
    $region5: #{casual_self_attention.1} parent=1 // loop_body
      %s23 = ssub.s32 %s18, 1
      %s24 = ssub.s32 %s18, 2
      %s25 = sadd.s32 %s18, 1
      %s26 = ssub.s32 %s18, %s25
      %p27 = scmp.eq.s32.totalorder %s26, 0
      %s29 = sadd.s32 %s28, 1
      %s30 = scalar_select %p27, %s28, %s29
      %p33 = pneg %p27
      %p34 = scmp.eq.s32.totalorder %s18, 1
      %p35 = por %p33, %p34
      %p36 = scmp.ne.s32.totalorder %s28, %s31
      %p37 = scmp.eq.s32.totalorder %s18, 0
      %p38 = por %p36, %p37
      %p39 = scmp.ne.s32.totalorder %s28, %s31
      %p40 = scmp.eq.s32.totalorder %s23, 1
      %p41 = por %p39, %p40
      %p42 = scmp.ne.s32.totalorder %s31, %s32
      %p43 = scmp.eq.s32.totalorder %s23, 0
      %p44 = por %p42, %p43
      %p45 = scmp.ne.s32.totalorder %s31, %s32
      %p46 = scmp.eq.s32.totalorder %s24, 1
      %p47 = por %p45, %p46
      %p49 = scmp.ne.s32.totalorder %s32, %s48
      %p50 = scmp.eq.s32.totalorder %s24, 0
      %p51 = por %p49, %p50
      %s53 = sadd.s32 %s52, 1
      %p56 = scmp.eq.s32.totalorder %s18, 1
      %p57 = scmp.ne.s32.totalorder %s52, %s54
      %p58 = scmp.eq.s32.totalorder %s18, 0
      %p59 = por %p57, %p58
      %p60 = scmp.ne.s32.totalorder %s52, %s54
      %p61 = scmp.eq.s32.totalorder %s23, 1
      %p62 = por %p60, %p61
      %p63 = scmp.ne.s32.totalorder %s54, %s55
      %p64 = scmp.eq.s32.totalorder %s23, 0
      %p65 = por %p63, %p64
      %p66 = scmp.ne.s32.totalorder %s54, %s55
      %p67 = scmp.eq.s32.totalorder %s24, 1
      %p68 = por %p66, %p67
      %p70 = scmp.ne.s32.totalorder %s55, %s69
      %p71 = scmp.eq.s32.totalorder %s24, 0
      %p72 = por %p70, %p71
      %s74 = sadd.s32 %s73, 1
      %p77 = scmp.eq.s32.totalorder %s18, 1
      %p78 = scmp.ne.s32.totalorder %s73, %s75
      %p79 = scmp.eq.s32.totalorder %s18, 0
      %p80 = por %p78, %p79
      %p81 = scmp.ne.s32.totalorder %s73, %s75
      %p82 = scmp.eq.s32.totalorder %s23, 1
      %p83 = por %p81, %p82
      %p84 = scmp.ne.s32.totalorder %s75, %s76
      %p85 = scmp.eq.s32.totalorder %s23, 0
      %p86 = por %p84, %p85
      %p87 = scmp.ne.s32.totalorder %s75, %s76
      %p88 = scmp.eq.s32.totalorder %s24, 1
      %p89 = por %p87, %p88
      %p91 = scmp.ne.s32.totalorder %s76, %s90
      %p92 = scmp.eq.s32.totalorder %s24, 0
      %p93 = por %p91, %p92
      %s95 = sadd.s32 %s94, 1
      %p98 = scmp.eq.s32.totalorder %s18, 1
      %p99 = scmp.ne.s32.totalorder %s94, %s96
      %p100 = scmp.eq.s32.totalorder %s18, 0
      %p101 = por %p99, %p100
      %p102 = scmp.ne.s32.totalorder %s94, %s96
      %p103 = scmp.eq.s32.totalorder %s23, 1
      %p104 = por %p102, %p103
      %p105 = scmp.ne.s32.totalorder %s96, %s97
      %p106 = scmp.eq.s32.totalorder %s23, 0
      %p107 = por %p105, %p106
      %p108 = scmp.ne.s32.totalorder %s96, %s97
      %p109 = scmp.eq.s32.totalorder %s24, 1
      %p110 = por %p108, %p109
      %p112 = scmp.ne.s32.totalorder %s97, %s111
      %p113 = scmp.eq.s32.totalorder %s24, 0
      %p114 = por %p112, %p113
      %s116 = sadd.s32 %s115, 1
      %p119 = scmp.eq.s32.totalorder %s18, 1
      %p120 = scmp.ne.s32.totalorder %s115, %s117
      %p121 = scmp.eq.s32.totalorder %s18, 0
      %p122 = por %p120, %p121
      %p123 = scmp.ne.s32.totalorder %s115, %s117
      %p124 = scmp.eq.s32.totalorder %s23, 1
      %p125 = por %p123, %p124
      %p126 = scmp.ne.s32.totalorder %s117, %s118
      %p127 = scmp.eq.s32.totalorder %s23, 0
      %p128 = por %p126, %p127
      %p129 = scmp.ne.s32.totalorder %s117, %s118
      %p130 = scmp.eq.s32.totalorder %s24, 1
      %p131 = por %p129, %p130
      %p133 = scmp.ne.s32.totalorder %s118, %s132
      %p134 = scmp.eq.s32.totalorder %s24, 0
      %p135 = por %p133, %p134
      %s136 = ssub.s32 %s18, %s25
      %p137 = scmp.eq.s32.totalorder %s136, 0
      %s139 = sadd.s32 %s138, 1
      %s140 = scalar_select %p137, %s138, %s139
      %p143 = pneg %p137
      %p144 = scmp.eq.s32.totalorder %s18, 1
      %p145 = por %p143, %p144
      %p146 = scmp.ne.s32.totalorder %s138, %s141
      %p147 = scmp.eq.s32.totalorder %s18, 0
      %p148 = por %p146, %p147
      %p149 = scmp.ne.s32.totalorder %s138, %s141
      %p150 = scmp.eq.s32.totalorder %s23, 1
      %p151 = por %p149, %p150
      %p152 = scmp.ne.s32.totalorder %s141, %s142
      %p153 = scmp.eq.s32.totalorder %s23, 0
      %p154 = por %p152, %p153
      %p155 = scmp.ne.s32.totalorder %s141, %s142
      %p156 = scmp.eq.s32.totalorder %s24, 1
      %p157 = por %p155, %p156
      %p159 = scmp.ne.s32.totalorder %s142, %s158
      %p160 = scmp.eq.s32.totalorder %s24, 0
      %p161 = por %p159, %p160
      %p162 = scmp.le.s32.totalorder 1, %s18
      %p163 = scmp.lt.s32.totalorder %s18, 3
      %p164 = pnand %p162, %p163
      %p165 = pneg %p164
      // Predicated region
      $region9: #{casual_self_attention.1} parent=5 // pred_check
        _
      $region10: #{casual_self_attention.1} parent=5 // pred_check_branch
        %167 = sbr.rel (%p164) target = $region12
      $region11: #{casual_self_attention.1} parent=5 // pred_region
        %s168 = ssub.s32 %s18, 1
        // Predicated region
        $region13: #{casual_self_attention.1} parent=11 // pred_check
          %p169 = pneg %p65
        $region14: #{casual_self_attention.1} parent=11 // pred_check_branch
          %171 = sbr.rel (%p169) target = $region16
        $region15: #{casual_self_attention.1} parent=11 // pred_region
          %173 = vsyncadd [#allocation7], 0
          %s174 = sshll.u32 %s1, 4
          %s175 = int_to_ptr.hbm [resolvable:$true] %s174
          %s176 = sshll.u32 [#allocation6], 4
          %s177 = int_to_ptr.vmem [resolvable:$true] %s176
          %182 = dma.hbm_to_vmem [thread:$0]  %s175, 6144, %s177, [#allocation7], 384, 384, 24
        $region16: #{casual_self_attention.1} parent=11 // pred_fallthru
          _
        // Predicated region
        $region17: #{casual_self_attention.1} parent=11 // pred_check
          %p183 = pneg %p86
        $region18: #{casual_self_attention.1} parent=11 // pred_check_branch
          %185 = sbr.rel (%p183) target = $region20
        $region19: #{casual_self_attention.1} parent=11 // pred_region
          _
        $region20: #{casual_self_attention.1} parent=11 // pred_fallthru
          _
        // Predicated region
        $region21: #{casual_self_attention.1} parent=11 // pred_check
          %p186 = pneg %p107
        $region22: #{casual_self_attention.1} parent=11 // pred_check_branch
          %188 = sbr.rel (%p186) target = $region24
        $region23: #{casual_self_attention.1} parent=11 // pred_region
          %190 = vsyncadd [#allocation7], 0
          %s191 = sshll.u32 %s3, 4
          %s192 = int_to_ptr.hbm [resolvable:$true] %s191
          %s193 = sshll.u32 [#allocation8], 4
          %s194 = int_to_ptr.vmem [resolvable:$true] %s193
          %199 = dma.hbm_to_vmem [thread:$0]  %s192, 2048, %s194, [#allocation7], 128, 128, 8
        $region24: #{casual_self_attention.1} parent=11 // pred_fallthru
          _
        // Predicated region
        $region25: #{casual_self_attention.1} parent=11 // pred_check
          %p200 = pneg %p128
        $region26: #{casual_self_attention.1} parent=11 // pred_check_branch
          %202 = sbr.rel (%p200) target = $region28
        $region27: #{casual_self_attention.1} parent=11 // pred_region
          _
        $region28: #{casual_self_attention.1} parent=11 // pred_fallthru
          _
      $region12: #{casual_self_attention.1} parent=5 // pred_fallthru
        _
      %p203 = scmp.lt.s32.totalorder %s18, 2
      // Predicated region
      $region29: #{casual_self_attention.1} parent=5 // pred_check
        %p204 = pneg %p203
      $region30: #{casual_self_attention.1} parent=5 // pred_check_branch
        %206 = sbr.rel (%p204) target = $region32
      $region31: #{casual_self_attention.1} parent=5 // pred_region
        // Predicated region
        $region33: #{casual_self_attention.1} parent=31 // pred_check
          %p207 = pneg %p38
        $region34: #{casual_self_attention.1} parent=31 // pred_check_branch
          %209 = sbr.rel (%p207) target = $region36
        $region35: #{casual_self_attention.1} parent=31 // pred_region
          %s210 = sand.u32 %s28, 1
          %s211 = scalar_lea.sflag [#allocation4], %s210
          %s212 = sand.u32 %s28, 1
          %s213 = smul.addr %s212, 128
          %s214 = scalar_lea.vmem [#allocation3], %s213
          %216 = vsyncadd %s211, 0
          %s217 = smul.addr %s18, 16
          %s218 = smul.addr %s217, 8
          %s219 = scalar_lea.hbm %s0, %s218
          %s220 = sshll.u32 %s219, 4
          %s221 = int_to_ptr.hbm [resolvable:$true] %s220
          %s222 = sshll.u32 %s214, 4
          %s223 = int_to_ptr.vmem [resolvable:$true] %s222
          %228 = dma.hbm_to_vmem [thread:$0]  %s221, 2048, %s223, %s211, 128, 128, 8
        $region36: #{casual_self_attention.1} parent=31 // pred_fallthru
          _
      $region32: #{casual_self_attention.1} parent=5 // pred_fallthru
        _
      %p229 = scmp.le.s32.totalorder 1, %s18
      %p230 = scmp.lt.s32.totalorder %s18, 3
      %p231 = pnand %p229, %p230
      %p232 = pneg %p231
      // Predicated region
      $region37: #{casual_self_attention.1} parent=5 // pred_check
        _
      $region38: #{casual_self_attention.1} parent=5 // pred_check_branch
        %234 = sbr.rel (%p231) target = $region40
      $region39: #{casual_self_attention.1} parent=5 // pred_region
        %s235 = ssub.s32 %s18, 1
        %s236 = sand.u32 %s31, 1
        %s237 = scalar_lea.sflag [#allocation4], %s236
        %s238 = sand.u32 %s31, 1
        %s239 = smul.addr %s238, 128
        %s240 = scalar_lea.vmem [#allocation3], %s239
        // Predicated region
        $region41: #{casual_self_attention.1} parent=39 // pred_check
          %p241 = pneg %p44
        $region42: #{casual_self_attention.1} parent=39 // pred_check_branch
          %243 = sbr.rel (%p241) target = $region44
        $region43: #{casual_self_attention.1} parent=39 // pred_region
          %245 = dma.done %s237, 2048
        $region44: #{casual_self_attention.1} parent=39 // pred_fallthru
          _
        // Predicated region
        $region45: #{casual_self_attention.1} parent=39 // pred_check
          %p246 = pneg %p65
        $region46: #{casual_self_attention.1} parent=39 // pred_check_branch
          %248 = sbr.rel (%p246) target = $region48
        $region47: #{casual_self_attention.1} parent=39 // pred_region
          %250 = dma.done [#allocation7], 6144
        $region48: #{casual_self_attention.1} parent=39 // pred_fallthru
          _
        // Predicated region
        $region49: #{casual_self_attention.1} parent=39 // pred_check
          %p251 = pneg %p107
        $region50: #{casual_self_attention.1} parent=39 // pred_check_branch
          %253 = sbr.rel (%p251) target = $region52
        $region51: #{casual_self_attention.1} parent=39 // pred_region
          %255 = dma.done [#allocation7], 2048
        $region52: #{casual_self_attention.1} parent=39 // pred_fallthru
          _
        %s256 = sand.u32 %s31, 1
        %s257 = scalar_lea.sflag [#allocation4], %s256
        %s258 = sand.u32 %s31, 1
        %s259 = smul.addr %s258, 128
        %s260 = scalar_lea.vmem [#allocation3], %s259
        %p261 = pneg %p44
        %p262 = pneg %p41
        %p263 = pneg %p65
        %p264 = pneg %p62
        %p265 = pneg %p86
        %p266 = pneg %p83
        %p267 = pneg %p107
        %p268 = pneg %p104
        %p269 = pneg %p128
        %p270 = pneg %p125
        %p271 = pneg %p154
        %p272 = pneg %p151
        %s273 = sand.u32 %s141, 1
        %s274 = scalar_lea.sflag [#allocation5], %s273
        %s275 = sand.u32 %s141, 1
        %s276 = smul.addr %s275, 128
        %s277 = scalar_lea.vmem [#allocation9], %s276
        %v278 = vld [vmem:[%s240] sm:$0xff]
        %v279 = vld [vmem:[%s240 + $0x8] sm:$0xff]
        %v280 = vld [vmem:[%s240 + $0x10] sm:$0xff]
        %v281 = vld [vmem:[%s240 + $0x18] sm:$0xff]
        %v282 = vld [vmem:[%s240 + $0x20] sm:$0xff]
        %v283 = vld [vmem:[%s240 + $0x28] sm:$0xff]
        %v284 = vld [vmem:[%s240 + $0x30] sm:$0xff]
        %v285 = vld [vmem:[%s240 + $0x38] sm:$0xff]
        %v286 = vld [vmem:[%s240 + $0x40] sm:$0xff]
        %v287 = vld [vmem:[%s240 + $0x48] sm:$0xff]
        %v288 = vld [vmem:[%s240 + $0x50] sm:$0xff]
        %v289 = vld [vmem:[%s240 + $0x58] sm:$0xff]
        %v290 = vld [vmem:[%s240 + $0x60] sm:$0xff]
        %v291 = vld [vmem:[%s240 + $0x68] sm:$0xff]
        %v292 = vld [vmem:[%s240 + $0x70] sm:$0xff]
        %v293 = vld [vmem:[%s240 + $0x78] sm:$0xff]
        %v294 = vpack.c.bf16 %v279, %v278
        %v295 = vpack.c.bf16 %v281, %v280
        %v296 = vpack.c.bf16 %v283, %v282
        %v297 = vpack.c.bf16 %v285, %v284
        %v298 = vpack.c.bf16 %v287, %v286
        %v299 = vpack.c.bf16 %v289, %v288
        %v300 = vpack.c.bf16 %v291, %v290
        %v301 = vpack.c.bf16 %v293, %v292
        %v302 = vld [vmem:[#allocation6] sm:$0xff]
        %v303 = vld [vmem:[#allocation6 + $0x8] sm:$0xff]
        %v304 = vld [vmem:[#allocation6 + $0x10] sm:$0xff]
        %v305 = vld [vmem:[#allocation6 + $0x18] sm:$0xff]
        %v306 = vld [vmem:[#allocation6 + $0x20] sm:$0xff]
        %v307 = vld [vmem:[#allocation6 + $0x28] sm:$0xff]
        %v308 = vld [vmem:[#allocation6 + $0x30] sm:$0xff]
        %v309 = vld [vmem:[#allocation6 + $0x38] sm:$0xff]
        %v310 = vld [vmem:[#allocation6 + $0x40] sm:$0xff]
        %v311 = vld [vmem:[#allocation6 + $0x48] sm:$0xff]
        %v312 = vld [vmem:[#allocation6 + $0x50] sm:$0xff]
        %v313 = vld [vmem:[#allocation6 + $0x58] sm:$0xff]
        %v314 = vld [vmem:[#allocation6 + $0x60] sm:$0xff]
        %v315 = vld [vmem:[#allocation6 + $0x68] sm:$0xff]
        %v316 = vld [vmem:[#allocation6 + $0x70] sm:$0xff]
        %v317 = vld [vmem:[#allocation6 + $0x78] sm:$0xff]
        %v318 = vld [vmem:[#allocation6 + $0x80] sm:$0xff]
        %v319 = vld [vmem:[#allocation6 + $0x88] sm:$0xff]
        %v320 = vld [vmem:[#allocation6 + $0x90] sm:$0xff]
        %v321 = vld [vmem:[#allocation6 + $0x98] sm:$0xff]
        %v322 = vld [vmem:[#allocation6 + $0xa0] sm:$0xff]
        %v323 = vld [vmem:[#allocation6 + $0xa8] sm:$0xff]
        %v324 = vld [vmem:[#allocation6 + $0xb0] sm:$0xff]
        %v325 = vld [vmem:[#allocation6 + $0xb8] sm:$0xff]
        %v326 = vld [vmem:[#allocation6 + $0xc0] sm:$0xff]
        %v327 = vld [vmem:[#allocation6 + $0xc8] sm:$0xff]
        %v328 = vld [vmem:[#allocation6 + $0xd0] sm:$0xff]
        %v329 = vld [vmem:[#allocation6 + $0xd8] sm:$0xff]
        %v330 = vld [vmem:[#allocation6 + $0xe0] sm:$0xff]
        %v331 = vld [vmem:[#allocation6 + $0xe8] sm:$0xff]
        %v332 = vld [vmem:[#allocation6 + $0xf0] sm:$0xff]
        %v333 = vld [vmem:[#allocation6 + $0xf8] sm:$0xff]
        %v334 = vld [vmem:[#allocation6 + $0x100] sm:$0xff]
        %v335 = vld [vmem:[#allocation6 + $0x108] sm:$0xff]
        %v336 = vld [vmem:[#allocation6 + $0x110] sm:$0xff]
        %v337 = vld [vmem:[#allocation6 + $0x118] sm:$0xff]
        %v338 = vld [vmem:[#allocation6 + $0x120] sm:$0xff]
        %v339 = vld [vmem:[#allocation6 + $0x128] sm:$0xff]
        %v340 = vld [vmem:[#allocation6 + $0x130] sm:$0xff]
        %v341 = vld [vmem:[#allocation6 + $0x138] sm:$0xff]
        %v342 = vld [vmem:[#allocation6 + $0x140] sm:$0xff]
        %v343 = vld [vmem:[#allocation6 + $0x148] sm:$0xff]
        %v344 = vld [vmem:[#allocation6 + $0x150] sm:$0xff]
        %v345 = vld [vmem:[#allocation6 + $0x158] sm:$0xff]
        %v346 = vld [vmem:[#allocation6 + $0x160] sm:$0xff]
        %v347 = vld [vmem:[#allocation6 + $0x168] sm:$0xff]
        %v348 = vld [vmem:[#allocation6 + $0x170] sm:$0xff]
        %v349 = vld [vmem:[#allocation6 + $0x178] sm:$0xff]
        %v350 = vpack.c.bf16 %v305, %v302
        %v351 = vpack.c.bf16 %v306, %v303
        %v352 = vpack.c.bf16 %v307, %v304
        %v353 = vpack.c.bf16 %v311, %v308
        %v354 = vpack.c.bf16 %v312, %v309
        %v355 = vpack.c.bf16 %v313, %v310
        %v356 = vpack.c.bf16 %v317, %v314
        %v357 = vpack.c.bf16 %v318, %v315
        %v358 = vpack.c.bf16 %v319, %v316
        %v359 = vpack.c.bf16 %v323, %v320
        %v360 = vpack.c.bf16 %v324, %v321
        %v361 = vpack.c.bf16 %v325, %v322
        %v362 = vpack.c.bf16 %v329, %v326
        %v363 = vpack.c.bf16 %v330, %v327
        %v364 = vpack.c.bf16 %v331, %v328
        %v365 = vpack.c.bf16 %v335, %v332
        %v366 = vpack.c.bf16 %v336, %v333
        %v367 = vpack.c.bf16 %v337, %v334
        %v368 = vpack.c.bf16 %v341, %v338
        %v369 = vpack.c.bf16 %v342, %v339
        %v370 = vpack.c.bf16 %v343, %v340
        %v371 = vpack.c.bf16 %v347, %v344
        %v372 = vpack.c.bf16 %v348, %v345
        %v373 = vpack.c.bf16 %v349, %v346
        %v374 = vld [vmem:[%s2] sm:$0x7]
        %v376 = vperm.slane %v374, 0
        %v377 = vperm.slane %v374, 1
        %v378 = vperm.slane %v374, 2
        %382 = vmatpush.bf16.msra.mxu0 %v371
        %383 = vmatpush.bf16.msra.mxu0 %v368
        %384 = vmatpush.bf16.msra.mxu0 %v365
        %385 = vmatpush.bf16.msra.mxu0 %v362
        %386 = vmatpush.bf16.msra.mxu0 %v359
        %387 = vmatpush.bf16.msra.mxu0 %v356
        %388 = vmatpush.bf16.msra.mxu0 %v353
        %389 = vmatpush.bf16.msra.mxu0 %v350
        %390 = vmatmul.bf16.gmra.mxu0 %v294
        %v391 = vpop.f32.mrf.mxu0
        %v392 = vadd.f32 %v376, %v391
        %v393 = vpop.f32.mrf.mxu0
        %v394 = vadd.f32 %v376, %v393
        %395 = vmatmul.bf16.gmra.mxu0 %v295
        %v396 = vpop.f32.mrf.mxu0
        %v397 = vadd.f32 %v376, %v396
        %v398 = vpop.f32.mrf.mxu0
        %v399 = vadd.f32 %v376, %v398
        %400 = vmatmul.bf16.gmra.mxu0 %v296
        %v401 = vpop.f32.mrf.mxu0
        %v402 = vadd.f32 %v376, %v401
        %v403 = vpop.f32.mrf.mxu0
        %v404 = vadd.f32 %v376, %v403
        %405 = vmatmul.bf16.gmra.mxu0 %v297
        %v406 = vpop.f32.mrf.mxu0
        %v407 = vadd.f32 %v376, %v406
        %v408 = vpop.f32.mrf.mxu0
        %v409 = vadd.f32 %v376, %v408
        %410 = vmatmul.bf16.gmra.mxu0 %v298
        %v411 = vpop.f32.mrf.mxu0
        %v412 = vadd.f32 %v376, %v411
        %v413 = vpop.f32.mrf.mxu0
        %v414 = vadd.f32 %v376, %v413
        %415 = vmatmul.bf16.gmra.mxu0 %v299
        %v416 = vpop.f32.mrf.mxu0
        %v417 = vadd.f32 %v376, %v416
        %v418 = vpop.f32.mrf.mxu0
        %v419 = vadd.f32 %v376, %v418
        %420 = vmatmul.bf16.gmra.mxu0 %v300
        %v421 = vpop.f32.mrf.mxu0
        %v422 = vadd.f32 %v376, %v421
        %v423 = vpop.f32.mrf.mxu0
        %v424 = vadd.f32 %v376, %v423
        %425 = vmatmul.bf16.gmra.mxu0 %v301
        %v426 = vpop.f32.mrf.mxu0
        %v427 = vadd.f32 %v376, %v426
        %v428 = vpop.f32.mrf.mxu0
        %v429 = vadd.f32 %v376, %v428
        %430 = vdwg.mxu0
        %431 = vmatpush.bf16.msra.mxu0 %v372
        %432 = vmatpush.bf16.msra.mxu0 %v369
        %433 = vmatpush.bf16.msra.mxu0 %v366
        %434 = vmatpush.bf16.msra.mxu0 %v363
        %435 = vmatpush.bf16.msra.mxu0 %v360
        %436 = vmatpush.bf16.msra.mxu0 %v357
        %437 = vmatpush.bf16.msra.mxu0 %v354
        %438 = vmatpush.bf16.msra.mxu0 %v351
        %439 = vmatmul.bf16.gmra.mxu0 %v294
        %v440 = vpop.f32.mrf.mxu0
        %v441 = vadd.f32 %v377, %v440
        %v442 = vpop.f32.mrf.mxu0
        %v443 = vadd.f32 %v377, %v442
        %444 = vmatmul.bf16.gmra.mxu0 %v295
        %v445 = vpop.f32.mrf.mxu0
        %v446 = vadd.f32 %v377, %v445
        %v447 = vpop.f32.mrf.mxu0
        %v448 = vadd.f32 %v377, %v447
        %449 = vmatmul.bf16.gmra.mxu0 %v296
        %v450 = vpop.f32.mrf.mxu0
        %v451 = vadd.f32 %v377, %v450
        %v452 = vpop.f32.mrf.mxu0
        %v453 = vadd.f32 %v377, %v452
        %454 = vmatmul.bf16.gmra.mxu0 %v297
        %v455 = vpop.f32.mrf.mxu0
        %v456 = vadd.f32 %v377, %v455
        %v457 = vpop.f32.mrf.mxu0
        %v458 = vadd.f32 %v377, %v457
        %459 = vmatmul.bf16.gmra.mxu0 %v298
        %v460 = vpop.f32.mrf.mxu0
        %v461 = vadd.f32 %v377, %v460
        %v462 = vpop.f32.mrf.mxu0
        %v463 = vadd.f32 %v377, %v462
        %464 = vmatmul.bf16.gmra.mxu0 %v299
        %v465 = vpop.f32.mrf.mxu0
        %v466 = vadd.f32 %v377, %v465
        %v467 = vpop.f32.mrf.mxu0
        %v468 = vadd.f32 %v377, %v467
        %469 = vmatmul.bf16.gmra.mxu0 %v300
        %v470 = vpop.f32.mrf.mxu0
        %v471 = vadd.f32 %v377, %v470
        %v472 = vpop.f32.mrf.mxu0
        %v473 = vadd.f32 %v377, %v472
        %474 = vmatmul.bf16.gmra.mxu0 %v301
        %v475 = vpop.f32.mrf.mxu0
        %v476 = vadd.f32 %v377, %v475
        %v477 = vpop.f32.mrf.mxu0
        %v478 = vadd.f32 %v377, %v477
        %479 = vdwg.mxu0
        %480 = vmatpush.bf16.msra.mxu0 %v373
        %481 = vmatpush.bf16.msra.mxu0 %v370
        %482 = vmatpush.bf16.msra.mxu0 %v367
        %483 = vmatpush.bf16.msra.mxu0 %v364
        %484 = vmatpush.bf16.msra.mxu0 %v361
        %485 = vmatpush.bf16.msra.mxu0 %v358
        %486 = vmatpush.bf16.msra.mxu0 %v355
        %487 = vmatpush.bf16.msra.mxu0 %v352
        %488 = vmatmul.bf16.gmra.mxu0 %v294
        %v489 = vpop.f32.mrf.mxu0
        %v490 = vadd.f32 %v378, %v489
        %v491 = vpop.f32.mrf.mxu0
        %v492 = vadd.f32 %v378, %v491
        %493 = vmatmul.bf16.gmra.mxu0 %v295
        %v494 = vpop.f32.mrf.mxu0
        %v495 = vadd.f32 %v378, %v494
        %v496 = vpop.f32.mrf.mxu0
        %v497 = vadd.f32 %v378, %v496
        %498 = vmatmul.bf16.gmra.mxu0 %v296
        %v499 = vpop.f32.mrf.mxu0
        %v500 = vadd.f32 %v378, %v499
        %v501 = vpop.f32.mrf.mxu0
        %v502 = vadd.f32 %v378, %v501
        %503 = vmatmul.bf16.gmra.mxu0 %v297
        %v504 = vpop.f32.mrf.mxu0
        %v505 = vadd.f32 %v378, %v504
        %v506 = vpop.f32.mrf.mxu0
        %v507 = vadd.f32 %v378, %v506
        %508 = vmatmul.bf16.gmra.mxu0 %v298
        %v509 = vpop.f32.mrf.mxu0
        %v510 = vadd.f32 %v378, %v509
        %v511 = vpop.f32.mrf.mxu0
        %v512 = vadd.f32 %v378, %v511
        %513 = vmatmul.bf16.gmra.mxu0 %v299
        %v514 = vpop.f32.mrf.mxu0
        %v515 = vadd.f32 %v378, %v514
        %v516 = vpop.f32.mrf.mxu0
        %v517 = vadd.f32 %v378, %v516
        %518 = vmatmul.bf16.gmra.mxu0 %v300
        %v519 = vpop.f32.mrf.mxu0
        %v520 = vadd.f32 %v378, %v519
        %v521 = vpop.f32.mrf.mxu0
        %v522 = vadd.f32 %v378, %v521
        %523 = vmatmul.bf16.gmra.mxu0 %v301
        %v524 = vpop.f32.mrf.mxu0
        %v525 = vadd.f32 %v378, %v524
        %v526 = vpop.f32.mrf.mxu0
        %v527 = vadd.f32 %v378, %v526
        %528 = vdwg.mxu0
        %529 = vst [vmem:[#allocation2] sm:$0xff] %v392
        %530 = vst [vmem:[#allocation2 + $0x8] sm:$0xff] %v441
        %531 = vst [vmem:[#allocation2 + $0x10] sm:$0xff] %v490
        %532 = vst [vmem:[#allocation2 + $0x18] sm:$0xff] %v394
        %533 = vst [vmem:[#allocation2 + $0x20] sm:$0xff] %v443
        %534 = vst [vmem:[#allocation2 + $0x28] sm:$0xff] %v492
        %535 = vst [vmem:[#allocation2 + $0x30] sm:$0xff] %v397
        %536 = vst [vmem:[#allocation2 + $0x38] sm:$0xff] %v446
        %537 = vst [vmem:[#allocation2 + $0x40] sm:$0xff] %v495
        %538 = vst [vmem:[#allocation2 + $0x48] sm:$0xff] %v399
        %539 = vst [vmem:[#allocation2 + $0x50] sm:$0xff] %v448
        %540 = vst [vmem:[#allocation2 + $0x58] sm:$0xff] %v497
        %541 = vst [vmem:[#allocation2 + $0x60] sm:$0xff] %v402
        %542 = vst [vmem:[#allocation2 + $0x68] sm:$0xff] %v451
        %543 = vst [vmem:[#allocation2 + $0x70] sm:$0xff] %v500
        %544 = vst [vmem:[#allocation2 + $0x78] sm:$0xff] %v404
        %545 = vst [vmem:[#allocation2 + $0x80] sm:$0xff] %v453
        %546 = vst [vmem:[#allocation2 + $0x88] sm:$0xff] %v502
        %547 = vst [vmem:[#allocation2 + $0x90] sm:$0xff] %v407
        %548 = vst [vmem:[#allocation2 + $0x98] sm:$0xff] %v456
        %549 = vst [vmem:[#allocation2 + $0xa0] sm:$0xff] %v505
        %550 = vst [vmem:[#allocation2 + $0xa8] sm:$0xff] %v409
        %551 = vst [vmem:[#allocation2 + $0xb0] sm:$0xff] %v458
        %552 = vst [vmem:[#allocation2 + $0xb8] sm:$0xff] %v507
        %553 = vst [vmem:[#allocation2 + $0xc0] sm:$0xff] %v412
        %554 = vst [vmem:[#allocation2 + $0xc8] sm:$0xff] %v461
        %555 = vst [vmem:[#allocation2 + $0xd0] sm:$0xff] %v510
        %556 = vst [vmem:[#allocation2 + $0xd8] sm:$0xff] %v414
        %557 = vst [vmem:[#allocation2 + $0xe0] sm:$0xff] %v463
        %558 = vst [vmem:[#allocation2 + $0xe8] sm:$0xff] %v512
        %559 = vst [vmem:[#allocation2 + $0xf0] sm:$0xff] %v417
        %560 = vst [vmem:[#allocation2 + $0xf8] sm:$0xff] %v466
        %561 = vst [vmem:[#allocation2 + $0x100] sm:$0xff] %v515
        %562 = vst [vmem:[#allocation2 + $0x108] sm:$0xff] %v419
        %563 = vst [vmem:[#allocation2 + $0x110] sm:$0xff] %v468
        %564 = vst [vmem:[#allocation2 + $0x118] sm:$0xff] %v517
        %565 = vst [vmem:[#allocation2 + $0x120] sm:$0xff] %v422
        %566 = vst [vmem:[#allocation2 + $0x128] sm:$0xff] %v471
        %567 = vst [vmem:[#allocation2 + $0x130] sm:$0xff] %v520
        %568 = vst [vmem:[#allocation2 + $0x138] sm:$0xff] %v424
        %569 = vst [vmem:[#allocation2 + $0x140] sm:$0xff] %v473
        %570 = vst [vmem:[#allocation2 + $0x148] sm:$0xff] %v522
        %571 = vst [vmem:[#allocation2 + $0x150] sm:$0xff] %v427
        %572 = vst [vmem:[#allocation2 + $0x158] sm:$0xff] %v476
        %573 = vst [vmem:[#allocation2 + $0x160] sm:$0xff] %v525
        %574 = vst [vmem:[#allocation2 + $0x168] sm:$0xff] %v429
        %575 = vst [vmem:[#allocation2 + $0x170] sm:$0xff] %v478
        %576 = vst [vmem:[#allocation2 + $0x178] sm:$0xff] %v527
        %v577 = vlaneseq
        %v578 = vshrl.u32 %v577, 7
        %v579 = vadd.s32 %v578, 8
        %v580 = vadd.s32 %v578, 16
        %v581 = vadd.s32 %v578, 24
        %v582 = vadd.s32 %v578, 32
        %v583 = vadd.s32 %v578, 40
        %v584 = vadd.s32 %v578, 48
        %v585 = vadd.s32 %v578, 56
        %v586 = vadd.s32 %v578, 64
        %v587 = vadd.s32 %v578, 72
        %v588 = vadd.s32 %v578, 80
        %v589 = vadd.s32 %v578, 88
        %v590 = vadd.s32 %v578, 96
        %v591 = vadd.s32 %v578, 104
        %v592 = vadd.s32 %v578, 112
        %v593 = vadd.s32 %v578, 120
        %v594 = vlaneseq
        %v595 = vand.u32 %v594, 127
        %vm596 = vcmp.le.s32.totalorder %v595, %v578
        %vm597 = vcmp.le.s32.totalorder %v595, %v579
        %vm598 = vcmp.le.s32.totalorder %v595, %v580
        %vm599 = vcmp.le.s32.totalorder %v595, %v581
        %vm600 = vcmp.le.s32.totalorder %v595, %v582
        %vm601 = vcmp.le.s32.totalorder %v595, %v583
        %vm602 = vcmp.le.s32.totalorder %v595, %v584
        %vm603 = vcmp.le.s32.totalorder %v595, %v585
        %vm604 = vcmp.le.s32.totalorder %v595, %v586
        %vm605 = vcmp.le.s32.totalorder %v595, %v587
        %vm606 = vcmp.le.s32.totalorder %v595, %v588
        %vm607 = vcmp.le.s32.totalorder %v595, %v589
        %vm608 = vcmp.le.s32.totalorder %v595, %v590
        %vm609 = vcmp.le.s32.totalorder %v595, %v591
        %vm610 = vcmp.le.s32.totalorder %v595, %v592
        %vm611 = vcmp.le.s32.totalorder %v595, %v593
        %v612 = vld [vmem:[#allocation2] sm:$0xff]
        %v613 = vld [vmem:[#allocation2 + $0x18] sm:$0xff]
        %v614 = vld [vmem:[#allocation2 + $0x30] sm:$0xff]
        %v615 = vld [vmem:[#allocation2 + $0x48] sm:$0xff]
        %v616 = vld [vmem:[#allocation2 + $0x60] sm:$0xff]
        %v617 = vld [vmem:[#allocation2 + $0x78] sm:$0xff]
        %v618 = vld [vmem:[#allocation2 + $0x90] sm:$0xff]
        %v619 = vld [vmem:[#allocation2 + $0xa8] sm:$0xff]
        %v620 = vld [vmem:[#allocation2 + $0xc0] sm:$0xff]
        %v621 = vld [vmem:[#allocation2 + $0xd8] sm:$0xff]
        %v622 = vld [vmem:[#allocation2 + $0xf0] sm:$0xff]
        %v623 = vld [vmem:[#allocation2 + $0x108] sm:$0xff]
        %v624 = vld [vmem:[#allocation2 + $0x120] sm:$0xff]
        %v625 = vld [vmem:[#allocation2 + $0x138] sm:$0xff]
        %v626 = vld [vmem:[#allocation2 + $0x150] sm:$0xff]
        %v627 = vld [vmem:[#allocation2 + $0x168] sm:$0xff]
        %v628 = vld [vmem:[#allocation2 + $0x8] sm:$0xff]
        %v629 = vld [vmem:[#allocation2 + $0x20] sm:$0xff]
        %v630 = vld [vmem:[#allocation2 + $0x38] sm:$0xff]
        %v631 = vld [vmem:[#allocation2 + $0x50] sm:$0xff]
        %v632 = vld [vmem:[#allocation2 + $0x68] sm:$0xff]
        %v633 = vld [vmem:[#allocation2 + $0x80] sm:$0xff]
        %v634 = vld [vmem:[#allocation2 + $0x98] sm:$0xff]
        %v635 = vld [vmem:[#allocation2 + $0xb0] sm:$0xff]
        %v636 = vld [vmem:[#allocation2 + $0xc8] sm:$0xff]
        %v637 = vld [vmem:[#allocation2 + $0xe0] sm:$0xff]
        %v638 = vld [vmem:[#allocation2 + $0xf8] sm:$0xff]
        %v639 = vld [vmem:[#allocation2 + $0x110] sm:$0xff]
        %v640 = vld [vmem:[#allocation2 + $0x128] sm:$0xff]
        %v641 = vld [vmem:[#allocation2 + $0x140] sm:$0xff]
        %v642 = vld [vmem:[#allocation2 + $0x158] sm:$0xff]
        %v643 = vld [vmem:[#allocation2 + $0x170] sm:$0xff]
        %v644 = vld [vmem:[#allocation2 + $0x10] sm:$0xff]
        %v645 = vld [vmem:[#allocation2 + $0x28] sm:$0xff]
        %v646 = vld [vmem:[#allocation2 + $0x40] sm:$0xff]
        %v647 = vld [vmem:[#allocation2 + $0x58] sm:$0xff]
        %v648 = vld [vmem:[#allocation2 + $0x70] sm:$0xff]
        %v649 = vld [vmem:[#allocation2 + $0x88] sm:$0xff]
        %v650 = vld [vmem:[#allocation2 + $0xa0] sm:$0xff]
        %v651 = vld [vmem:[#allocation2 + $0xb8] sm:$0xff]
        %v652 = vld [vmem:[#allocation2 + $0xd0] sm:$0xff]
        %v653 = vld [vmem:[#allocation2 + $0xe8] sm:$0xff]
        %v654 = vld [vmem:[#allocation2 + $0x100] sm:$0xff]
        %v655 = vld [vmem:[#allocation2 + $0x118] sm:$0xff]
        %v656 = vld [vmem:[#allocation2 + $0x130] sm:$0xff]
        %v657 = vld [vmem:[#allocation2 + $0x148] sm:$0xff]
        %v658 = vld [vmem:[#allocation2 + $0x160] sm:$0xff]
        %v659 = vld [vmem:[#allocation2 + $0x178] sm:$0xff]
        %v660 = vmul.f32 %v612, 0.17677669
        %v661 = vmul.f32 %v613, 0.17677669
        %v662 = vmul.f32 %v614, 0.17677669
        %v663 = vmul.f32 %v615, 0.17677669
        %v664 = vmul.f32 %v616, 0.17677669
        %v665 = vmul.f32 %v617, 0.17677669
        %v666 = vmul.f32 %v618, 0.17677669
        %v667 = vmul.f32 %v619, 0.17677669
        %v668 = vmul.f32 %v620, 0.17677669
        %v669 = vmul.f32 %v621, 0.17677669
        %v670 = vmul.f32 %v622, 0.17677669
        %v671 = vmul.f32 %v623, 0.17677669
        %v672 = vmul.f32 %v624, 0.17677669
        %v673 = vmul.f32 %v625, 0.17677669
        %v674 = vmul.f32 %v626, 0.17677669
        %v675 = vmul.f32 %v627, 0.17677669
        %v676 = vpack.c.bf16 %v661, %v660
        %v677 = vpack.c.bf16 %v663, %v662
        %v678 = vpack.c.bf16 %v665, %v664
        %v679 = vpack.c.bf16 %v667, %v666
        %v680 = vpack.c.bf16 %v669, %v668
        %v681 = vpack.c.bf16 %v671, %v670
        %v682 = vpack.c.bf16 %v673, %v672
        %v683 = vpack.c.bf16 %v675, %v674
        %v684 = vpack.c.bf16 %v629, %v628
        %v685 = vpack.c.bf16 %v631, %v630
        %v686 = vpack.c.bf16 %v633, %v632
        %v687 = vpack.c.bf16 %v635, %v634
        %v688 = vpack.c.bf16 %v637, %v636
        %v689 = vpack.c.bf16 %v639, %v638
        %v690 = vpack.c.bf16 %v641, %v640
        %v691 = vpack.c.bf16 %v643, %v642
        %vm692 = vcmask 261120
        %v694 = vsel %vm692, %v676, 0
        %v697 = vsel %vm692, %v677, 0
        %v700 = vsel %vm692, %v678, 0
        %v703 = vsel %vm692, %v679, 0
        %v706 = vsel %vm692, %v680, 0
        %v709 = vsel %vm692, %v681, 0
        %v712 = vsel %vm692, %v682, 0
        %v715 = vsel %vm692, %v683, 0
        %v718 = vsel %vm692, %v684, 0
        %v721 = vsel %vm692, %v685, 0
        %v724 = vsel %vm692, %v686, 0
        %v727 = vsel %vm692, %v687, 0
        %v730 = vsel %vm692, %v688, 0
        %v733 = vsel %vm692, %v689, 0
        %v736 = vsel %vm692, %v690, 0
        %v739 = vsel %vm692, %v691, 0
        %741 = vmatpush.bf16.xpose.msra.mxu0 %v739
        %742 = vmatpush.bf16.xpose.msra.mxu0 %v736
        %743 = vmatpush.bf16.xpose.msra.mxu0 %v733
        %744 = vmatpush.bf16.xpose.msra.mxu0 %v730
        %745 = vmatpush.bf16.xpose.msra.mxu0 %v727
        %746 = vmatpush.bf16.xpose.msra.mxu0 %v724
        %747 = vmatpush.bf16.xpose.msra.mxu0 %v721
        %748 = vmatpush.bf16.xpose.msra.mxu0 %v718
        %749 = vmatmul.bf16.gmra.mxu0 %v694
        %v750 = vpop.f32.mrf.mxu0
        %v751 = vadd.f32 0.0, %v750
        %v752 = vpop.f32.mrf.mxu0
        %v753 = vadd.f32 0.0, %v752
        %754 = vmatmul.bf16.gmra.mxu0 %v697
        %v755 = vpop.f32.mrf.mxu0
        %v756 = vadd.f32 0.0, %v755
        %v757 = vpop.f32.mrf.mxu0
        %v758 = vadd.f32 0.0, %v757
        %759 = vmatmul.bf16.gmra.mxu0 %v700
        %v760 = vpop.f32.mrf.mxu0
        %v761 = vadd.f32 0.0, %v760
        %v762 = vpop.f32.mrf.mxu0
        %v763 = vadd.f32 0.0, %v762
        %764 = vmatmul.bf16.gmra.mxu0 %v703
        %v765 = vpop.f32.mrf.mxu0
        %v766 = vadd.f32 0.0, %v765
        %v767 = vpop.f32.mrf.mxu0
        %v768 = vadd.f32 0.0, %v767
        %769 = vmatmul.bf16.gmra.mxu0 %v706
        %v770 = vpop.f32.mrf.mxu0
        %v771 = vadd.f32 0.0, %v770
        %v772 = vpop.f32.mrf.mxu0
        %v773 = vadd.f32 0.0, %v772
        %774 = vmatmul.bf16.gmra.mxu0 %v709
        %v775 = vpop.f32.mrf.mxu0
        %v776 = vadd.f32 0.0, %v775
        %v777 = vpop.f32.mrf.mxu0
        %v778 = vadd.f32 0.0, %v777
        %779 = vmatmul.bf16.gmra.mxu0 %v712
        %v780 = vpop.f32.mrf.mxu0
        %v781 = vadd.f32 0.0, %v780
        %v782 = vpop.f32.mrf.mxu0
        %v783 = vadd.f32 0.0, %v782
        %784 = vmatmul.bf16.gmra.mxu0 %v715
        %v785 = vpop.f32.mrf.mxu0
        %v786 = vadd.f32 0.0, %v785
        %v787 = vpop.f32.mrf.mxu0
        %v788 = vadd.f32 0.0, %v787
        %789 = vdwg.mxu0
        %v790 = vsel %vm596, %v751, -1e+30
        %v791 = vsel %vm597, %v753, -1e+30
        %v792 = vsel %vm598, %v756, -1e+30
        %v793 = vsel %vm599, %v758, -1e+30
        %v794 = vsel %vm600, %v761, -1e+30
        %v795 = vsel %vm601, %v763, -1e+30
        %v796 = vsel %vm602, %v766, -1e+30
        %v797 = vsel %vm603, %v768, -1e+30
        %v798 = vsel %vm604, %v771, -1e+30
        %v799 = vsel %vm605, %v773, -1e+30
        %v800 = vsel %vm606, %v776, -1e+30
        %v801 = vsel %vm607, %v778, -1e+30
        %v802 = vsel %vm608, %v781, -1e+30
        %v803 = vsel %vm609, %v783, -1e+30
        %v804 = vsel %vm610, %v786, -1e+30
        %v805 = vsel %vm611, %v788, -1e+30
        %806 = vmax.xlane.f32.xlu0 %v790
        %v807 = vpop.xlane.xlu0 %806
        %808 = vmax.xlane.f32.xlu0 %v791
        %v809 = vpop.xlane.xlu0 %808
        %810 = vmax.xlane.f32.xlu0 %v792
        %v811 = vpop.xlane.xlu0 %810
        %812 = vmax.xlane.f32.xlu0 %v793
        %v813 = vpop.xlane.xlu0 %812
        %814 = vmax.xlane.f32.xlu0 %v794
        %v815 = vpop.xlane.xlu0 %814
        %816 = vmax.xlane.f32.xlu0 %v795
        %v817 = vpop.xlane.xlu0 %816
        %818 = vmax.xlane.f32.xlu0 %v796
        %v819 = vpop.xlane.xlu0 %818
        %820 = vmax.xlane.f32.xlu0 %v797
        %v821 = vpop.xlane.xlu0 %820
        %822 = vmax.xlane.f32.xlu0 %v798
        %v823 = vpop.xlane.xlu0 %822
        %824 = vmax.xlane.f32.xlu0 %v799
        %v825 = vpop.xlane.xlu0 %824
        %826 = vmax.xlane.f32.xlu0 %v800
        %v827 = vpop.xlane.xlu0 %826
        %828 = vmax.xlane.f32.xlu0 %v801
        %v829 = vpop.xlane.xlu0 %828
        %830 = vmax.xlane.f32.xlu0 %v802
        %v831 = vpop.xlane.xlu0 %830
        %832 = vmax.xlane.f32.xlu0 %v803
        %v833 = vpop.xlane.xlu0 %832
        %834 = vmax.xlane.f32.xlu0 %v804
        %v835 = vpop.xlane.xlu0 %834
        %836 = vmax.xlane.f32.xlu0 %v805
        %v837 = vpop.xlane.xlu0 %836
        %v838 = vsub.f32 %v790, %v807
        %v839 = vsub.f32 %v791, %v809
        %v840 = vsub.f32 %v792, %v811
        %v841 = vsub.f32 %v793, %v813
        %v842 = vsub.f32 %v794, %v815
        %v843 = vsub.f32 %v795, %v817
        %v844 = vsub.f32 %v796, %v819
        %v845 = vsub.f32 %v797, %v821
        %v846 = vsub.f32 %v798, %v823
        %v847 = vsub.f32 %v799, %v825
        %v848 = vsub.f32 %v800, %v827
        %v849 = vsub.f32 %v801, %v829
        %v850 = vsub.f32 %v802, %v831
        %v851 = vsub.f32 %v803, %v833
        %v852 = vsub.f32 %v804, %v835
        %v853 = vsub.f32 %v805, %v837
        %v854 = vmul.f32 %v838, 1.442695
        %v855 = vpow.pop %v854
        %v856 = vmul.f32 %v839, 1.442695
        %v857 = vpow.pop %v856
        %v858 = vmul.f32 %v840, 1.442695
        %v859 = vpow.pop %v858
        %v860 = vmul.f32 %v841, 1.442695
        %v861 = vpow.pop %v860
        %v862 = vmul.f32 %v842, 1.442695
        %v863 = vpow.pop %v862
        %v864 = vmul.f32 %v843, 1.442695
        %v865 = vpow.pop %v864
        %v866 = vmul.f32 %v844, 1.442695
        %v867 = vpow.pop %v866
        %v868 = vmul.f32 %v845, 1.442695
        %v869 = vpow.pop %v868
        %v870 = vmul.f32 %v846, 1.442695
        %v871 = vpow.pop %v870
        %v872 = vmul.f32 %v847, 1.442695
        %v873 = vpow.pop %v872
        %v874 = vmul.f32 %v848, 1.442695
        %v875 = vpow.pop %v874
        %v876 = vmul.f32 %v849, 1.442695
        %v877 = vpow.pop %v876
        %v878 = vmul.f32 %v850, 1.442695
        %v879 = vpow.pop %v878
        %v880 = vmul.f32 %v851, 1.442695
        %v881 = vpow.pop %v880
        %v882 = vmul.f32 %v852, 1.442695
        %v883 = vpow.pop %v882
        %v884 = vmul.f32 %v853, 1.442695
        %v885 = vpow.pop %v884
        %886 = vadd.xlane.f32.xlu0 %v855
        %v887 = vpop.xlane.xlu0 %886
        %888 = vadd.xlane.f32.xlu0 %v857
        %v889 = vpop.xlane.xlu0 %888
        %890 = vadd.xlane.f32.xlu0 %v859
        %v891 = vpop.xlane.xlu0 %890
        %892 = vadd.xlane.f32.xlu0 %v861
        %v893 = vpop.xlane.xlu0 %892
        %894 = vadd.xlane.f32.xlu0 %v863
        %v895 = vpop.xlane.xlu0 %894
        %896 = vadd.xlane.f32.xlu0 %v865
        %v897 = vpop.xlane.xlu0 %896
        %898 = vadd.xlane.f32.xlu0 %v867
        %v899 = vpop.xlane.xlu0 %898
        %900 = vadd.xlane.f32.xlu0 %v869
        %v901 = vpop.xlane.xlu0 %900
        %902 = vadd.xlane.f32.xlu0 %v871
        %v903 = vpop.xlane.xlu0 %902
        %904 = vadd.xlane.f32.xlu0 %v873
        %v905 = vpop.xlane.xlu0 %904
        %906 = vadd.xlane.f32.xlu0 %v875
        %v907 = vpop.xlane.xlu0 %906
        %908 = vadd.xlane.f32.xlu0 %v877
        %v909 = vpop.xlane.xlu0 %908
        %910 = vadd.xlane.f32.xlu0 %v879
        %v911 = vpop.xlane.xlu0 %910
        %912 = vadd.xlane.f32.xlu0 %v881
        %v913 = vpop.xlane.xlu0 %912
        %914 = vadd.xlane.f32.xlu0 %v883
        %v915 = vpop.xlane.xlu0 %914
        %916 = vadd.xlane.f32.xlu0 %v885
        %v917 = vpop.xlane.xlu0 %916
        %v918 = vrcp.pop %v887
        %v919 = vrcp.pop %v889
        %v920 = vrcp.pop %v891
        %v921 = vrcp.pop %v893
        %v922 = vrcp.pop %v895
        %v923 = vrcp.pop %v897
        %v924 = vrcp.pop %v899
        %v925 = vrcp.pop %v901
        %v926 = vrcp.pop %v903
        %v927 = vrcp.pop %v905
        %v928 = vrcp.pop %v907
        %v929 = vrcp.pop %v909
        %v930 = vrcp.pop %v911
        %v931 = vrcp.pop %v913
        %v932 = vrcp.pop %v915
        %v933 = vrcp.pop %v917
        %v934 = vmul.f32 %v855, %v918
        %v935 = vmul.f32 %v857, %v919
        %v936 = vmul.f32 %v859, %v920
        %v937 = vmul.f32 %v861, %v921
        %v938 = vmul.f32 %v863, %v922
        %v939 = vmul.f32 %v865, %v923
        %v940 = vmul.f32 %v867, %v924
        %v941 = vmul.f32 %v869, %v925
        %v942 = vmul.f32 %v871, %v926
        %v943 = vmul.f32 %v873, %v927
        %v944 = vmul.f32 %v875, %v928
        %v945 = vmul.f32 %v877, %v929
        %v946 = vmul.f32 %v879, %v930
        %v947 = vmul.f32 %v881, %v931
        %v948 = vmul.f32 %v883, %v932
        %v949 = vmul.f32 %v885, %v933
        %v950 = vpack.c.bf16 %v935, %v934
        %v951 = vpack.c.bf16 %v937, %v936
        %v952 = vpack.c.bf16 %v939, %v938
        %v953 = vpack.c.bf16 %v941, %v940
        %v954 = vpack.c.bf16 %v943, %v942
        %v955 = vpack.c.bf16 %v945, %v944
        %v956 = vpack.c.bf16 %v947, %v946
        %v957 = vpack.c.bf16 %v949, %v948
        %v958 = vpack.c.bf16 %v645, %v644
        %v959 = vpack.c.bf16 %v647, %v646
        %v960 = vpack.c.bf16 %v649, %v648
        %v961 = vpack.c.bf16 %v651, %v650
        %v962 = vpack.c.bf16 %v653, %v652
        %v963 = vpack.c.bf16 %v655, %v654
        %v964 = vpack.c.bf16 %v657, %v656
        %v965 = vpack.c.bf16 %v659, %v658
        %966 = vmatpush.bf16.msra.mxu0 %v965
        %967 = vmatpush.bf16.msra.mxu0 %v964
        %968 = vmatpush.bf16.msra.mxu0 %v963
        %969 = vmatpush.bf16.msra.mxu0 %v962
        %970 = vmatpush.bf16.msra.mxu0 %v961
        %971 = vmatpush.bf16.msra.mxu0 %v960
        %972 = vmatpush.bf16.msra.mxu0 %v959
        %973 = vmatpush.bf16.msra.mxu0 %v958
        %974 = vmatmul.bf16.gmra.mxu0 %v950
        %v975 = vpop.f32.mrf.mxu0
        %v976 = vadd.f32 0.0, %v975
        %v977 = vpop.f32.mrf.mxu0
        %v978 = vadd.f32 0.0, %v977
        %979 = vmatmul.bf16.gmra.mxu0 %v951
        %v980 = vpop.f32.mrf.mxu0
        %v981 = vadd.f32 0.0, %v980
        %v982 = vpop.f32.mrf.mxu0
        %v983 = vadd.f32 0.0, %v982
        %984 = vmatmul.bf16.gmra.mxu0 %v952
        %v985 = vpop.f32.mrf.mxu0
        %v986 = vadd.f32 0.0, %v985
        %v987 = vpop.f32.mrf.mxu0
        %v988 = vadd.f32 0.0, %v987
        %989 = vmatmul.bf16.gmra.mxu0 %v953
        %v990 = vpop.f32.mrf.mxu0
        %v991 = vadd.f32 0.0, %v990
        %v992 = vpop.f32.mrf.mxu0
        %v993 = vadd.f32 0.0, %v992
        %994 = vmatmul.bf16.gmra.mxu0 %v954
        %v995 = vpop.f32.mrf.mxu0
        %v996 = vadd.f32 0.0, %v995
        %v997 = vpop.f32.mrf.mxu0
        %v998 = vadd.f32 0.0, %v997
        %999 = vmatmul.bf16.gmra.mxu0 %v955
        %v1000 = vpop.f32.mrf.mxu0
        %v1001 = vadd.f32 0.0, %v1000
        %v1002 = vpop.f32.mrf.mxu0
        %v1003 = vadd.f32 0.0, %v1002
        %1004 = vmatmul.bf16.gmra.mxu0 %v956
        %v1005 = vpop.f32.mrf.mxu0
        %v1006 = vadd.f32 0.0, %v1005
        %v1007 = vpop.f32.mrf.mxu0
        %v1008 = vadd.f32 0.0, %v1007
        %1009 = vmatmul.bf16.gmra.mxu0 %v957
        %v1010 = vpop.f32.mrf.mxu0
        %v1011 = vadd.f32 0.0, %v1010
        %v1012 = vpop.f32.mrf.mxu0
        %v1013 = vadd.f32 0.0, %v1012
        %1014 = vdwg.mxu0
        %1023 = vrot.lane.b32.xlu0 %v676, 96
        %v1024 = vpop.permute.xlu0 %1023
        %1025 = vrot.lane.b32.xlu0 %v677, 96
        %v1026 = vpop.permute.xlu0 %1025
        %1027 = vrot.lane.b32.xlu0 %v678, 96
        %v1028 = vpop.permute.xlu0 %1027
        %1029 = vrot.lane.b32.xlu0 %v679, 96
        %v1030 = vpop.permute.xlu0 %1029
        %1031 = vrot.lane.b32.xlu0 %v680, 96
        %v1032 = vpop.permute.xlu0 %1031
        %1033 = vrot.lane.b32.xlu0 %v681, 96
        %v1034 = vpop.permute.xlu0 %1033
        %1035 = vrot.lane.b32.xlu0 %v682, 96
        %v1036 = vpop.permute.xlu0 %1035
        %1037 = vrot.lane.b32.xlu0 %v683, 96
        %v1038 = vpop.permute.xlu0 %1037
        %1047 = vrot.lane.b32.xlu0 %v684, 96
        %v1048 = vpop.permute.xlu0 %1047
        %1049 = vrot.lane.b32.xlu0 %v685, 96
        %v1050 = vpop.permute.xlu0 %1049
        %1051 = vrot.lane.b32.xlu0 %v686, 96
        %v1052 = vpop.permute.xlu0 %1051
        %1053 = vrot.lane.b32.xlu0 %v687, 96
        %v1054 = vpop.permute.xlu0 %1053
        %1055 = vrot.lane.b32.xlu0 %v688, 96
        %v1056 = vpop.permute.xlu0 %1055
        %1057 = vrot.lane.b32.xlu0 %v689, 96
        %v1058 = vpop.permute.xlu0 %1057
        %1059 = vrot.lane.b32.xlu0 %v690, 96
        %v1060 = vpop.permute.xlu0 %1059
        %1061 = vrot.lane.b32.xlu0 %v691, 96
        %v1062 = vpop.permute.xlu0 %1061
        %v1064 = vsel %vm692, %v1024, 0
        %v1067 = vsel %vm692, %v1026, 0
        %v1070 = vsel %vm692, %v1028, 0
        %v1073 = vsel %vm692, %v1030, 0
        %v1076 = vsel %vm692, %v1032, 0
        %v1079 = vsel %vm692, %v1034, 0
        %v1082 = vsel %vm692, %v1036, 0
        %v1085 = vsel %vm692, %v1038, 0
        %v1088 = vsel %vm692, %v1048, 0
        %v1091 = vsel %vm692, %v1050, 0
        %v1094 = vsel %vm692, %v1052, 0
        %v1097 = vsel %vm692, %v1054, 0
        %v1100 = vsel %vm692, %v1056, 0
        %v1103 = vsel %vm692, %v1058, 0
        %v1106 = vsel %vm692, %v1060, 0
        %v1109 = vsel %vm692, %v1062, 0
        %1111 = vmatpush.bf16.xpose.msra.mxu0 %v1109
        %1112 = vmatpush.bf16.xpose.msra.mxu0 %v1106
        %1113 = vmatpush.bf16.xpose.msra.mxu0 %v1103
        %1114 = vmatpush.bf16.xpose.msra.mxu0 %v1100
        %1115 = vmatpush.bf16.xpose.msra.mxu0 %v1097
        %1116 = vmatpush.bf16.xpose.msra.mxu0 %v1094
        %1117 = vmatpush.bf16.xpose.msra.mxu0 %v1091
        %1118 = vmatpush.bf16.xpose.msra.mxu0 %v1088
        %1119 = vmatmul.bf16.gmra.mxu0 %v1064
        %v1120 = vpop.f32.mrf.mxu0
        %v1121 = vadd.f32 0.0, %v1120
        %v1122 = vpop.f32.mrf.mxu0
        %v1123 = vadd.f32 0.0, %v1122
        %1124 = vmatmul.bf16.gmra.mxu0 %v1067
        %v1125 = vpop.f32.mrf.mxu0
        %v1126 = vadd.f32 0.0, %v1125
        %v1127 = vpop.f32.mrf.mxu0
        %v1128 = vadd.f32 0.0, %v1127
        %1129 = vmatmul.bf16.gmra.mxu0 %v1070
        %v1130 = vpop.f32.mrf.mxu0
        %v1131 = vadd.f32 0.0, %v1130
        %v1132 = vpop.f32.mrf.mxu0
        %v1133 = vadd.f32 0.0, %v1132
        %1134 = vmatmul.bf16.gmra.mxu0 %v1073
        %v1135 = vpop.f32.mrf.mxu0
        %v1136 = vadd.f32 0.0, %v1135
        %v1137 = vpop.f32.mrf.mxu0
        %v1138 = vadd.f32 0.0, %v1137
        %1139 = vmatmul.bf16.gmra.mxu0 %v1076
        %v1140 = vpop.f32.mrf.mxu0
        %v1141 = vadd.f32 0.0, %v1140
        %v1142 = vpop.f32.mrf.mxu0
        %v1143 = vadd.f32 0.0, %v1142
        %1144 = vmatmul.bf16.gmra.mxu0 %v1079
        %v1145 = vpop.f32.mrf.mxu0
        %v1146 = vadd.f32 0.0, %v1145
        %v1147 = vpop.f32.mrf.mxu0
        %v1148 = vadd.f32 0.0, %v1147
        %1149 = vmatmul.bf16.gmra.mxu0 %v1082
        %v1150 = vpop.f32.mrf.mxu0
        %v1151 = vadd.f32 0.0, %v1150
        %v1152 = vpop.f32.mrf.mxu0
        %v1153 = vadd.f32 0.0, %v1152
        %1154 = vmatmul.bf16.gmra.mxu0 %v1085
        %v1155 = vpop.f32.mrf.mxu0
        %v1156 = vadd.f32 0.0, %v1155
        %v1157 = vpop.f32.mrf.mxu0
        %v1158 = vadd.f32 0.0, %v1157
        %1159 = vdwg.mxu0
        %v1160 = vsel %vm596, %v1121, -1e+30
        %v1161 = vsel %vm597, %v1123, -1e+30
        %v1162 = vsel %vm598, %v1126, -1e+30
        %v1163 = vsel %vm599, %v1128, -1e+30
        %v1164 = vsel %vm600, %v1131, -1e+30
        %v1165 = vsel %vm601, %v1133, -1e+30
        %v1166 = vsel %vm602, %v1136, -1e+30
        %v1167 = vsel %vm603, %v1138, -1e+30
        %v1168 = vsel %vm604, %v1141, -1e+30
        %v1169 = vsel %vm605, %v1143, -1e+30
        %v1170 = vsel %vm606, %v1146, -1e+30
        %v1171 = vsel %vm607, %v1148, -1e+30
        %v1172 = vsel %vm608, %v1151, -1e+30
        %v1173 = vsel %vm609, %v1153, -1e+30
        %v1174 = vsel %vm610, %v1156, -1e+30
        %v1175 = vsel %vm611, %v1158, -1e+30
        %1176 = vmax.xlane.f32.xlu0 %v1160
        %v1177 = vpop.xlane.xlu0 %1176
        %1178 = vmax.xlane.f32.xlu0 %v1161
        %v1179 = vpop.xlane.xlu0 %1178
        %1180 = vmax.xlane.f32.xlu0 %v1162
        %v1181 = vpop.xlane.xlu0 %1180
        %1182 = vmax.xlane.f32.xlu0 %v1163
        %v1183 = vpop.xlane.xlu0 %1182
        %1184 = vmax.xlane.f32.xlu0 %v1164
        %v1185 = vpop.xlane.xlu0 %1184
        %1186 = vmax.xlane.f32.xlu0 %v1165
        %v1187 = vpop.xlane.xlu0 %1186
        %1188 = vmax.xlane.f32.xlu0 %v1166
        %v1189 = vpop.xlane.xlu0 %1188
        %1190 = vmax.xlane.f32.xlu0 %v1167
        %v1191 = vpop.xlane.xlu0 %1190
        %1192 = vmax.xlane.f32.xlu0 %v1168
        %v1193 = vpop.xlane.xlu0 %1192
        %1194 = vmax.xlane.f32.xlu0 %v1169
        %v1195 = vpop.xlane.xlu0 %1194
        %1196 = vmax.xlane.f32.xlu0 %v1170
        %v1197 = vpop.xlane.xlu0 %1196
        %1198 = vmax.xlane.f32.xlu0 %v1171
        %v1199 = vpop.xlane.xlu0 %1198
        %1200 = vmax.xlane.f32.xlu0 %v1172
        %v1201 = vpop.xlane.xlu0 %1200
        %1202 = vmax.xlane.f32.xlu0 %v1173
        %v1203 = vpop.xlane.xlu0 %1202
        %1204 = vmax.xlane.f32.xlu0 %v1174
        %v1205 = vpop.xlane.xlu0 %1204
        %1206 = vmax.xlane.f32.xlu0 %v1175
        %v1207 = vpop.xlane.xlu0 %1206
        %v1208 = vsub.f32 %v1160, %v1177
        %v1209 = vsub.f32 %v1161, %v1179
        %v1210 = vsub.f32 %v1162, %v1181
        %v1211 = vsub.f32 %v1163, %v1183
        %v1212 = vsub.f32 %v1164, %v1185
        %v1213 = vsub.f32 %v1165, %v1187
        %v1214 = vsub.f32 %v1166, %v1189
        %v1215 = vsub.f32 %v1167, %v1191
        %v1216 = vsub.f32 %v1168, %v1193
        %v1217 = vsub.f32 %v1169, %v1195
        %v1218 = vsub.f32 %v1170, %v1197
        %v1219 = vsub.f32 %v1171, %v1199
        %v1220 = vsub.f32 %v1172, %v1201
        %v1221 = vsub.f32 %v1173, %v1203
        %v1222 = vsub.f32 %v1174, %v1205
        %v1223 = vsub.f32 %v1175, %v1207
        %v1224 = vmul.f32 %v1208, 1.442695
        %v1225 = vpow.pop %v1224
        %v1226 = vmul.f32 %v1209, 1.442695
        %v1227 = vpow.pop %v1226
        %v1228 = vmul.f32 %v1210, 1.442695
        %v1229 = vpow.pop %v1228
        %v1230 = vmul.f32 %v1211, 1.442695
        %v1231 = vpow.pop %v1230
        %v1232 = vmul.f32 %v1212, 1.442695
        %v1233 = vpow.pop %v1232
        %v1234 = vmul.f32 %v1213, 1.442695
        %v1235 = vpow.pop %v1234
        %v1236 = vmul.f32 %v1214, 1.442695
        %v1237 = vpow.pop %v1236
        %v1238 = vmul.f32 %v1215, 1.442695
        %v1239 = vpow.pop %v1238
        %v1240 = vmul.f32 %v1216, 1.442695
        %v1241 = vpow.pop %v1240
        %v1242 = vmul.f32 %v1217, 1.442695
        %v1243 = vpow.pop %v1242
        %v1244 = vmul.f32 %v1218, 1.442695
        %v1245 = vpow.pop %v1244
        %v1246 = vmul.f32 %v1219, 1.442695
        %v1247 = vpow.pop %v1246
        %v1248 = vmul.f32 %v1220, 1.442695
        %v1249 = vpow.pop %v1248
        %v1250 = vmul.f32 %v1221, 1.442695
        %v1251 = vpow.pop %v1250
        %v1252 = vmul.f32 %v1222, 1.442695
        %v1253 = vpow.pop %v1252
        %v1254 = vmul.f32 %v1223, 1.442695
        %v1255 = vpow.pop %v1254
        %1256 = vadd.xlane.f32.xlu0 %v1225
        %v1257 = vpop.xlane.xlu0 %1256
        %1258 = vadd.xlane.f32.xlu0 %v1227
        %v1259 = vpop.xlane.xlu0 %1258
        %1260 = vadd.xlane.f32.xlu0 %v1229
        %v1261 = vpop.xlane.xlu0 %1260
        %1262 = vadd.xlane.f32.xlu0 %v1231
        %v1263 = vpop.xlane.xlu0 %1262
        %1264 = vadd.xlane.f32.xlu0 %v1233
        %v1265 = vpop.xlane.xlu0 %1264
        %1266 = vadd.xlane.f32.xlu0 %v1235
        %v1267 = vpop.xlane.xlu0 %1266
        %1268 = vadd.xlane.f32.xlu0 %v1237
        %v1269 = vpop.xlane.xlu0 %1268
        %1270 = vadd.xlane.f32.xlu0 %v1239
        %v1271 = vpop.xlane.xlu0 %1270
        %1272 = vadd.xlane.f32.xlu0 %v1241
        %v1273 = vpop.xlane.xlu0 %1272
        %1274 = vadd.xlane.f32.xlu0 %v1243
        %v1275 = vpop.xlane.xlu0 %1274
        %1276 = vadd.xlane.f32.xlu0 %v1245
        %v1277 = vpop.xlane.xlu0 %1276
        %1278 = vadd.xlane.f32.xlu0 %v1247
        %v1279 = vpop.xlane.xlu0 %1278
        %1280 = vadd.xlane.f32.xlu0 %v1249
        %v1281 = vpop.xlane.xlu0 %1280
        %1282 = vadd.xlane.f32.xlu0 %v1251
        %v1283 = vpop.xlane.xlu0 %1282
        %1284 = vadd.xlane.f32.xlu0 %v1253
        %v1285 = vpop.xlane.xlu0 %1284
        %1286 = vadd.xlane.f32.xlu0 %v1255
        %v1287 = vpop.xlane.xlu0 %1286
        %v1288 = vrcp.pop %v1257
        %v1289 = vrcp.pop %v1259
        %v1290 = vrcp.pop %v1261
        %v1291 = vrcp.pop %v1263
        %v1292 = vrcp.pop %v1265
        %v1293 = vrcp.pop %v1267
        %v1294 = vrcp.pop %v1269
        %v1295 = vrcp.pop %v1271
        %v1296 = vrcp.pop %v1273
        %v1297 = vrcp.pop %v1275
        %v1298 = vrcp.pop %v1277
        %v1299 = vrcp.pop %v1279
        %v1300 = vrcp.pop %v1281
        %v1301 = vrcp.pop %v1283
        %v1302 = vrcp.pop %v1285
        %v1303 = vrcp.pop %v1287
        %v1304 = vmul.f32 %v1225, %v1288
        %v1305 = vmul.f32 %v1227, %v1289
        %v1306 = vmul.f32 %v1229, %v1290
        %v1307 = vmul.f32 %v1231, %v1291
        %v1308 = vmul.f32 %v1233, %v1292
        %v1309 = vmul.f32 %v1235, %v1293
        %v1310 = vmul.f32 %v1237, %v1294
        %v1311 = vmul.f32 %v1239, %v1295
        %v1312 = vmul.f32 %v1241, %v1296
        %v1313 = vmul.f32 %v1243, %v1297
        %v1314 = vmul.f32 %v1245, %v1298
        %v1315 = vmul.f32 %v1247, %v1299
        %v1316 = vmul.f32 %v1249, %v1300
        %v1317 = vmul.f32 %v1251, %v1301
        %v1318 = vmul.f32 %v1253, %v1302
        %v1319 = vmul.f32 %v1255, %v1303
        %v1320 = vpack.c.bf16 %v1305, %v1304
        %v1321 = vpack.c.bf16 %v1307, %v1306
        %v1322 = vpack.c.bf16 %v1309, %v1308
        %v1323 = vpack.c.bf16 %v1311, %v1310
        %v1324 = vpack.c.bf16 %v1313, %v1312
        %v1325 = vpack.c.bf16 %v1315, %v1314
        %v1326 = vpack.c.bf16 %v1317, %v1316
        %v1327 = vpack.c.bf16 %v1319, %v1318
        %1336 = vrot.lane.b32.xlu0 %v958, 96
        %v1337 = vpop.permute.xlu0 %1336
        %1338 = vrot.lane.b32.xlu0 %v959, 96
        %v1339 = vpop.permute.xlu0 %1338
        %1340 = vrot.lane.b32.xlu0 %v960, 96
        %v1341 = vpop.permute.xlu0 %1340
        %1342 = vrot.lane.b32.xlu0 %v961, 96
        %v1343 = vpop.permute.xlu0 %1342
        %1344 = vrot.lane.b32.xlu0 %v962, 96
        %v1345 = vpop.permute.xlu0 %1344
        %1346 = vrot.lane.b32.xlu0 %v963, 96
        %v1347 = vpop.permute.xlu0 %1346
        %1348 = vrot.lane.b32.xlu0 %v964, 96
        %v1349 = vpop.permute.xlu0 %1348
        %1350 = vrot.lane.b32.xlu0 %v965, 96
        %v1351 = vpop.permute.xlu0 %1350
        %1360 = vmatpush.bf16.msra.mxu0 %v1351
        %1361 = vmatpush.bf16.msra.mxu0 %v1349
        %1362 = vmatpush.bf16.msra.mxu0 %v1347
        %1363 = vmatpush.bf16.msra.mxu0 %v1345
        %1364 = vmatpush.bf16.msra.mxu0 %v1343
        %1365 = vmatpush.bf16.msra.mxu0 %v1341
        %1366 = vmatpush.bf16.msra.mxu0 %v1339
        %1367 = vmatpush.bf16.msra.mxu0 %v1337
        %1368 = vmatmul.bf16.gmra.mxu0 %v1320
        %v1369 = vpop.f32.mrf.mxu0
        %v1370 = vadd.f32 0.0, %v1369
        %v1371 = vpop.f32.mrf.mxu0
        %v1372 = vadd.f32 0.0, %v1371
        %1373 = vmatmul.bf16.gmra.mxu0 %v1321
        %v1374 = vpop.f32.mrf.mxu0
        %v1375 = vadd.f32 0.0, %v1374
        %v1376 = vpop.f32.mrf.mxu0
        %v1377 = vadd.f32 0.0, %v1376
        %1378 = vmatmul.bf16.gmra.mxu0 %v1322
        %v1379 = vpop.f32.mrf.mxu0
        %v1380 = vadd.f32 0.0, %v1379
        %v1381 = vpop.f32.mrf.mxu0
        %v1382 = vadd.f32 0.0, %v1381
        %1383 = vmatmul.bf16.gmra.mxu0 %v1323
        %v1384 = vpop.f32.mrf.mxu0
        %v1385 = vadd.f32 0.0, %v1384
        %v1386 = vpop.f32.mrf.mxu0
        %v1387 = vadd.f32 0.0, %v1386
        %1388 = vmatmul.bf16.gmra.mxu0 %v1324
        %v1389 = vpop.f32.mrf.mxu0
        %v1390 = vadd.f32 0.0, %v1389
        %v1391 = vpop.f32.mrf.mxu0
        %v1392 = vadd.f32 0.0, %v1391
        %1393 = vmatmul.bf16.gmra.mxu0 %v1325
        %v1394 = vpop.f32.mrf.mxu0
        %v1395 = vadd.f32 0.0, %v1394
        %v1396 = vpop.f32.mrf.mxu0
        %v1397 = vadd.f32 0.0, %v1396
        %1398 = vmatmul.bf16.gmra.mxu0 %v1326
        %v1399 = vpop.f32.mrf.mxu0
        %v1400 = vadd.f32 0.0, %v1399
        %v1401 = vpop.f32.mrf.mxu0
        %v1402 = vadd.f32 0.0, %v1401
        %1403 = vmatmul.bf16.gmra.mxu0 %v1327
        %v1404 = vpop.f32.mrf.mxu0
        %v1405 = vadd.f32 0.0, %v1404
        %v1406 = vpop.f32.mrf.mxu0
        %v1407 = vadd.f32 0.0, %v1406
        %1408 = vdwg.mxu0
        %1409 = vrot.lane.b32.xlu0 %v676, 64
        %v1410 = vpop.permute.xlu0 %1409
        %1411 = vrot.lane.b32.xlu0 %v677, 64
        %v1412 = vpop.permute.xlu0 %1411
        %1413 = vrot.lane.b32.xlu0 %v678, 64
        %v1414 = vpop.permute.xlu0 %1413
        %1415 = vrot.lane.b32.xlu0 %v679, 64
        %v1416 = vpop.permute.xlu0 %1415
        %1417 = vrot.lane.b32.xlu0 %v680, 64
        %v1418 = vpop.permute.xlu0 %1417
        %1419 = vrot.lane.b32.xlu0 %v681, 64
        %v1420 = vpop.permute.xlu0 %1419
        %1421 = vrot.lane.b32.xlu0 %v682, 64
        %v1422 = vpop.permute.xlu0 %1421
        %1423 = vrot.lane.b32.xlu0 %v683, 64
        %v1424 = vpop.permute.xlu0 %1423
        %1425 = vrot.lane.b32.xlu0 %v684, 64
        %v1426 = vpop.permute.xlu0 %1425
        %1427 = vrot.lane.b32.xlu0 %v685, 64
        %v1428 = vpop.permute.xlu0 %1427
        %1429 = vrot.lane.b32.xlu0 %v686, 64
        %v1430 = vpop.permute.xlu0 %1429
        %1431 = vrot.lane.b32.xlu0 %v687, 64
        %v1432 = vpop.permute.xlu0 %1431
        %1433 = vrot.lane.b32.xlu0 %v688, 64
        %v1434 = vpop.permute.xlu0 %1433
        %1435 = vrot.lane.b32.xlu0 %v689, 64
        %v1436 = vpop.permute.xlu0 %1435
        %1437 = vrot.lane.b32.xlu0 %v690, 64
        %v1438 = vpop.permute.xlu0 %1437
        %1439 = vrot.lane.b32.xlu0 %v691, 64
        %v1440 = vpop.permute.xlu0 %1439
        %v1442 = vsel %vm692, %v1410, 0
        %v1445 = vsel %vm692, %v1412, 0
        %v1448 = vsel %vm692, %v1414, 0
        %v1451 = vsel %vm692, %v1416, 0
        %v1454 = vsel %vm692, %v1418, 0
        %v1457 = vsel %vm692, %v1420, 0
        %v1460 = vsel %vm692, %v1422, 0
        %v1463 = vsel %vm692, %v1424, 0
        %v1466 = vsel %vm692, %v1426, 0
        %v1469 = vsel %vm692, %v1428, 0
        %v1472 = vsel %vm692, %v1430, 0
        %v1475 = vsel %vm692, %v1432, 0
        %v1478 = vsel %vm692, %v1434, 0
        %v1481 = vsel %vm692, %v1436, 0
        %v1484 = vsel %vm692, %v1438, 0
        %v1487 = vsel %vm692, %v1440, 0
        %1489 = vmatpush.bf16.xpose.msra.mxu0 %v1487
        %1490 = vmatpush.bf16.xpose.msra.mxu0 %v1484
        %1491 = vmatpush.bf16.xpose.msra.mxu0 %v1481
        %1492 = vmatpush.bf16.xpose.msra.mxu0 %v1478
        %1493 = vmatpush.bf16.xpose.msra.mxu0 %v1475
        %1494 = vmatpush.bf16.xpose.msra.mxu0 %v1472
        %1495 = vmatpush.bf16.xpose.msra.mxu0 %v1469
        %1496 = vmatpush.bf16.xpose.msra.mxu0 %v1466
        %1497 = vmatmul.bf16.gmra.mxu0 %v1442
        %v1498 = vpop.f32.mrf.mxu0
        %v1499 = vadd.f32 0.0, %v1498
        %v1500 = vpop.f32.mrf.mxu0
        %v1501 = vadd.f32 0.0, %v1500
        %1502 = vmatmul.bf16.gmra.mxu0 %v1445
        %v1503 = vpop.f32.mrf.mxu0
        %v1504 = vadd.f32 0.0, %v1503
        %v1505 = vpop.f32.mrf.mxu0
        %v1506 = vadd.f32 0.0, %v1505
        %1507 = vmatmul.bf16.gmra.mxu0 %v1448
        %v1508 = vpop.f32.mrf.mxu0
        %v1509 = vadd.f32 0.0, %v1508
        %v1510 = vpop.f32.mrf.mxu0
        %v1511 = vadd.f32 0.0, %v1510
        %1512 = vmatmul.bf16.gmra.mxu0 %v1451
        %v1513 = vpop.f32.mrf.mxu0
        %v1514 = vadd.f32 0.0, %v1513
        %v1515 = vpop.f32.mrf.mxu0
        %v1516 = vadd.f32 0.0, %v1515
        %1517 = vmatmul.bf16.gmra.mxu0 %v1454
        %v1518 = vpop.f32.mrf.mxu0
        %v1519 = vadd.f32 0.0, %v1518
        %v1520 = vpop.f32.mrf.mxu0
        %v1521 = vadd.f32 0.0, %v1520
        %1522 = vmatmul.bf16.gmra.mxu0 %v1457
        %v1523 = vpop.f32.mrf.mxu0
        %v1524 = vadd.f32 0.0, %v1523
        %v1525 = vpop.f32.mrf.mxu0
        %v1526 = vadd.f32 0.0, %v1525
        %1527 = vmatmul.bf16.gmra.mxu0 %v1460
        %v1528 = vpop.f32.mrf.mxu0
        %v1529 = vadd.f32 0.0, %v1528
        %v1530 = vpop.f32.mrf.mxu0
        %v1531 = vadd.f32 0.0, %v1530
        %1532 = vmatmul.bf16.gmra.mxu0 %v1463
        %v1533 = vpop.f32.mrf.mxu0
        %v1534 = vadd.f32 0.0, %v1533
        %v1535 = vpop.f32.mrf.mxu0
        %v1536 = vadd.f32 0.0, %v1535
        %1537 = vdwg.mxu0
        %v1538 = vsel %vm596, %v1499, -1e+30
        %v1539 = vsel %vm597, %v1501, -1e+30
        %v1540 = vsel %vm598, %v1504, -1e+30
        %v1541 = vsel %vm599, %v1506, -1e+30
        %v1542 = vsel %vm600, %v1509, -1e+30
        %v1543 = vsel %vm601, %v1511, -1e+30
        %v1544 = vsel %vm602, %v1514, -1e+30
        %v1545 = vsel %vm603, %v1516, -1e+30
        %v1546 = vsel %vm604, %v1519, -1e+30
        %v1547 = vsel %vm605, %v1521, -1e+30
        %v1548 = vsel %vm606, %v1524, -1e+30
        %v1549 = vsel %vm607, %v1526, -1e+30
        %v1550 = vsel %vm608, %v1529, -1e+30
        %v1551 = vsel %vm609, %v1531, -1e+30
        %v1552 = vsel %vm610, %v1534, -1e+30
        %v1553 = vsel %vm611, %v1536, -1e+30
        %1554 = vmax.xlane.f32.xlu0 %v1538
        %v1555 = vpop.xlane.xlu0 %1554
        %1556 = vmax.xlane.f32.xlu0 %v1539
        %v1557 = vpop.xlane.xlu0 %1556
        %1558 = vmax.xlane.f32.xlu0 %v1540
        %v1559 = vpop.xlane.xlu0 %1558
        %1560 = vmax.xlane.f32.xlu0 %v1541
        %v1561 = vpop.xlane.xlu0 %1560
        %1562 = vmax.xlane.f32.xlu0 %v1542
        %v1563 = vpop.xlane.xlu0 %1562
        %1564 = vmax.xlane.f32.xlu0 %v1543
        %v1565 = vpop.xlane.xlu0 %1564
        %1566 = vmax.xlane.f32.xlu0 %v1544
        %v1567 = vpop.xlane.xlu0 %1566
        %1568 = vmax.xlane.f32.xlu0 %v1545
        %v1569 = vpop.xlane.xlu0 %1568
        %1570 = vmax.xlane.f32.xlu0 %v1546
        %v1571 = vpop.xlane.xlu0 %1570
        %1572 = vmax.xlane.f32.xlu0 %v1547
        %v1573 = vpop.xlane.xlu0 %1572
        %1574 = vmax.xlane.f32.xlu0 %v1548
        %v1575 = vpop.xlane.xlu0 %1574
        %1576 = vmax.xlane.f32.xlu0 %v1549
        %v1577 = vpop.xlane.xlu0 %1576
        %1578 = vmax.xlane.f32.xlu0 %v1550
        %v1579 = vpop.xlane.xlu0 %1578
        %1580 = vmax.xlane.f32.xlu0 %v1551
        %v1581 = vpop.xlane.xlu0 %1580
        %1582 = vmax.xlane.f32.xlu0 %v1552
        %v1583 = vpop.xlane.xlu0 %1582
        %1584 = vmax.xlane.f32.xlu0 %v1553
        %v1585 = vpop.xlane.xlu0 %1584
        %v1586 = vsub.f32 %v1538, %v1555
        %v1587 = vsub.f32 %v1539, %v1557
        %v1588 = vsub.f32 %v1540, %v1559
        %v1589 = vsub.f32 %v1541, %v1561
        %v1590 = vsub.f32 %v1542, %v1563
        %v1591 = vsub.f32 %v1543, %v1565
        %v1592 = vsub.f32 %v1544, %v1567
        %v1593 = vsub.f32 %v1545, %v1569
        %v1594 = vsub.f32 %v1546, %v1571
        %v1595 = vsub.f32 %v1547, %v1573
        %v1596 = vsub.f32 %v1548, %v1575
        %v1597 = vsub.f32 %v1549, %v1577
        %v1598 = vsub.f32 %v1550, %v1579
        %v1599 = vsub.f32 %v1551, %v1581
        %v1600 = vsub.f32 %v1552, %v1583
        %v1601 = vsub.f32 %v1553, %v1585
        %v1602 = vmul.f32 %v1586, 1.442695
        %v1603 = vpow.pop %v1602
        %v1604 = vmul.f32 %v1587, 1.442695
        %v1605 = vpow.pop %v1604
        %v1606 = vmul.f32 %v1588, 1.442695
        %v1607 = vpow.pop %v1606
        %v1608 = vmul.f32 %v1589, 1.442695
        %v1609 = vpow.pop %v1608
        %v1610 = vmul.f32 %v1590, 1.442695
        %v1611 = vpow.pop %v1610
        %v1612 = vmul.f32 %v1591, 1.442695
        %v1613 = vpow.pop %v1612
        %v1614 = vmul.f32 %v1592, 1.442695
        %v1615 = vpow.pop %v1614
        %v1616 = vmul.f32 %v1593, 1.442695
        %v1617 = vpow.pop %v1616
        %v1618 = vmul.f32 %v1594, 1.442695
        %v1619 = vpow.pop %v1618
        %v1620 = vmul.f32 %v1595, 1.442695
        %v1621 = vpow.pop %v1620
        %v1622 = vmul.f32 %v1596, 1.442695
        %v1623 = vpow.pop %v1622
        %v1624 = vmul.f32 %v1597, 1.442695
        %v1625 = vpow.pop %v1624
        %v1626 = vmul.f32 %v1598, 1.442695
        %v1627 = vpow.pop %v1626
        %v1628 = vmul.f32 %v1599, 1.442695
        %v1629 = vpow.pop %v1628
        %v1630 = vmul.f32 %v1600, 1.442695
        %v1631 = vpow.pop %v1630
        %v1632 = vmul.f32 %v1601, 1.442695
        %v1633 = vpow.pop %v1632
        %1634 = vadd.xlane.f32.xlu0 %v1603
        %v1635 = vpop.xlane.xlu0 %1634
        %1636 = vadd.xlane.f32.xlu0 %v1605
        %v1637 = vpop.xlane.xlu0 %1636
        %1638 = vadd.xlane.f32.xlu0 %v1607
        %v1639 = vpop.xlane.xlu0 %1638
        %1640 = vadd.xlane.f32.xlu0 %v1609
        %v1641 = vpop.xlane.xlu0 %1640
        %1642 = vadd.xlane.f32.xlu0 %v1611
        %v1643 = vpop.xlane.xlu0 %1642
        %1644 = vadd.xlane.f32.xlu0 %v1613
        %v1645 = vpop.xlane.xlu0 %1644
        %1646 = vadd.xlane.f32.xlu0 %v1615
        %v1647 = vpop.xlane.xlu0 %1646
        %1648 = vadd.xlane.f32.xlu0 %v1617
        %v1649 = vpop.xlane.xlu0 %1648
        %1650 = vadd.xlane.f32.xlu0 %v1619
        %v1651 = vpop.xlane.xlu0 %1650
        %1652 = vadd.xlane.f32.xlu0 %v1621
        %v1653 = vpop.xlane.xlu0 %1652
        %1654 = vadd.xlane.f32.xlu0 %v1623
        %v1655 = vpop.xlane.xlu0 %1654
        %1656 = vadd.xlane.f32.xlu0 %v1625
        %v1657 = vpop.xlane.xlu0 %1656
        %1658 = vadd.xlane.f32.xlu0 %v1627
        %v1659 = vpop.xlane.xlu0 %1658
        %1660 = vadd.xlane.f32.xlu0 %v1629
        %v1661 = vpop.xlane.xlu0 %1660
        %1662 = vadd.xlane.f32.xlu0 %v1631
        %v1663 = vpop.xlane.xlu0 %1662
        %1664 = vadd.xlane.f32.xlu0 %v1633
        %v1665 = vpop.xlane.xlu0 %1664
        %v1666 = vrcp.pop %v1635
        %v1667 = vrcp.pop %v1637
        %v1668 = vrcp.pop %v1639
        %v1669 = vrcp.pop %v1641
        %v1670 = vrcp.pop %v1643
        %v1671 = vrcp.pop %v1645
        %v1672 = vrcp.pop %v1647
        %v1673 = vrcp.pop %v1649
        %v1674 = vrcp.pop %v1651
        %v1675 = vrcp.pop %v1653
        %v1676 = vrcp.pop %v1655
        %v1677 = vrcp.pop %v1657
        %v1678 = vrcp.pop %v1659
        %v1679 = vrcp.pop %v1661
        %v1680 = vrcp.pop %v1663
        %v1681 = vrcp.pop %v1665
        %v1682 = vmul.f32 %v1603, %v1666
        %v1683 = vmul.f32 %v1605, %v1667
        %v1684 = vmul.f32 %v1607, %v1668
        %v1685 = vmul.f32 %v1609, %v1669
        %v1686 = vmul.f32 %v1611, %v1670
        %v1687 = vmul.f32 %v1613, %v1671
        %v1688 = vmul.f32 %v1615, %v1672
        %v1689 = vmul.f32 %v1617, %v1673
        %v1690 = vmul.f32 %v1619, %v1674
        %v1691 = vmul.f32 %v1621, %v1675
        %v1692 = vmul.f32 %v1623, %v1676
        %v1693 = vmul.f32 %v1625, %v1677
        %v1694 = vmul.f32 %v1627, %v1678
        %v1695 = vmul.f32 %v1629, %v1679
        %v1696 = vmul.f32 %v1631, %v1680
        %v1697 = vmul.f32 %v1633, %v1681
        %v1698 = vpack.c.bf16 %v1683, %v1682
        %v1699 = vpack.c.bf16 %v1685, %v1684
        %v1700 = vpack.c.bf16 %v1687, %v1686
        %v1701 = vpack.c.bf16 %v1689, %v1688
        %v1702 = vpack.c.bf16 %v1691, %v1690
        %v1703 = vpack.c.bf16 %v1693, %v1692
        %v1704 = vpack.c.bf16 %v1695, %v1694
        %v1705 = vpack.c.bf16 %v1697, %v1696
        %1706 = vrot.lane.b32.xlu0 %v958, 64
        %v1707 = vpop.permute.xlu0 %1706
        %1708 = vrot.lane.b32.xlu0 %v959, 64
        %v1709 = vpop.permute.xlu0 %1708
        %1710 = vrot.lane.b32.xlu0 %v960, 64
        %v1711 = vpop.permute.xlu0 %1710
        %1712 = vrot.lane.b32.xlu0 %v961, 64
        %v1713 = vpop.permute.xlu0 %1712
        %1714 = vrot.lane.b32.xlu0 %v962, 64
        %v1715 = vpop.permute.xlu0 %1714
        %1716 = vrot.lane.b32.xlu0 %v963, 64
        %v1717 = vpop.permute.xlu0 %1716
        %1718 = vrot.lane.b32.xlu0 %v964, 64
        %v1719 = vpop.permute.xlu0 %1718
        %1720 = vrot.lane.b32.xlu0 %v965, 64
        %v1721 = vpop.permute.xlu0 %1720
        %1730 = vmatpush.bf16.msra.mxu0 %v1721
        %1731 = vmatpush.bf16.msra.mxu0 %v1719
        %1732 = vmatpush.bf16.msra.mxu0 %v1717
        %1733 = vmatpush.bf16.msra.mxu0 %v1715
        %1734 = vmatpush.bf16.msra.mxu0 %v1713
        %1735 = vmatpush.bf16.msra.mxu0 %v1711
        %1736 = vmatpush.bf16.msra.mxu0 %v1709
        %1737 = vmatpush.bf16.msra.mxu0 %v1707
        %1738 = vmatmul.bf16.gmra.mxu0 %v1698
        %v1739 = vpop.f32.mrf.mxu0
        %v1740 = vadd.f32 0.0, %v1739
        %v1741 = vpop.f32.mrf.mxu0
        %v1742 = vadd.f32 0.0, %v1741
        %1743 = vmatmul.bf16.gmra.mxu0 %v1699
        %v1744 = vpop.f32.mrf.mxu0
        %v1745 = vadd.f32 0.0, %v1744
        %v1746 = vpop.f32.mrf.mxu0
        %v1747 = vadd.f32 0.0, %v1746
        %1748 = vmatmul.bf16.gmra.mxu0 %v1700
        %v1749 = vpop.f32.mrf.mxu0
        %v1750 = vadd.f32 0.0, %v1749
        %v1751 = vpop.f32.mrf.mxu0
        %v1752 = vadd.f32 0.0, %v1751
        %1753 = vmatmul.bf16.gmra.mxu0 %v1701
        %v1754 = vpop.f32.mrf.mxu0
        %v1755 = vadd.f32 0.0, %v1754
        %v1756 = vpop.f32.mrf.mxu0
        %v1757 = vadd.f32 0.0, %v1756
        %1758 = vmatmul.bf16.gmra.mxu0 %v1702
        %v1759 = vpop.f32.mrf.mxu0
        %v1760 = vadd.f32 0.0, %v1759
        %v1761 = vpop.f32.mrf.mxu0
        %v1762 = vadd.f32 0.0, %v1761
        %1763 = vmatmul.bf16.gmra.mxu0 %v1703
        %v1764 = vpop.f32.mrf.mxu0
        %v1765 = vadd.f32 0.0, %v1764
        %v1766 = vpop.f32.mrf.mxu0
        %v1767 = vadd.f32 0.0, %v1766
        %1768 = vmatmul.bf16.gmra.mxu0 %v1704
        %v1769 = vpop.f32.mrf.mxu0
        %v1770 = vadd.f32 0.0, %v1769
        %v1771 = vpop.f32.mrf.mxu0
        %v1772 = vadd.f32 0.0, %v1771
        %1773 = vmatmul.bf16.gmra.mxu0 %v1705
        %v1774 = vpop.f32.mrf.mxu0
        %v1775 = vadd.f32 0.0, %v1774
        %v1776 = vpop.f32.mrf.mxu0
        %v1777 = vadd.f32 0.0, %v1776
        %1778 = vdwg.mxu0
        %1779 = vrot.lane.b32.xlu0 %v676, 32
        %v1780 = vpop.permute.xlu0 %1779
        %1781 = vrot.lane.b32.xlu0 %v677, 32
        %v1782 = vpop.permute.xlu0 %1781
        %1783 = vrot.lane.b32.xlu0 %v678, 32
        %v1784 = vpop.permute.xlu0 %1783
        %1785 = vrot.lane.b32.xlu0 %v679, 32
        %v1786 = vpop.permute.xlu0 %1785
        %1787 = vrot.lane.b32.xlu0 %v680, 32
        %v1788 = vpop.permute.xlu0 %1787
        %1789 = vrot.lane.b32.xlu0 %v681, 32
        %v1790 = vpop.permute.xlu0 %1789
        %1791 = vrot.lane.b32.xlu0 %v682, 32
        %v1792 = vpop.permute.xlu0 %1791
        %1793 = vrot.lane.b32.xlu0 %v683, 32
        %v1794 = vpop.permute.xlu0 %1793
        %1795 = vrot.lane.b32.xlu0 %v684, 32
        %v1796 = vpop.permute.xlu0 %1795
        %1797 = vrot.lane.b32.xlu0 %v685, 32
        %v1798 = vpop.permute.xlu0 %1797
        %1799 = vrot.lane.b32.xlu0 %v686, 32
        %v1800 = vpop.permute.xlu0 %1799
        %1801 = vrot.lane.b32.xlu0 %v687, 32
        %v1802 = vpop.permute.xlu0 %1801
        %1803 = vrot.lane.b32.xlu0 %v688, 32
        %v1804 = vpop.permute.xlu0 %1803
        %1805 = vrot.lane.b32.xlu0 %v689, 32
        %v1806 = vpop.permute.xlu0 %1805
        %1807 = vrot.lane.b32.xlu0 %v690, 32
        %v1808 = vpop.permute.xlu0 %1807
        %1809 = vrot.lane.b32.xlu0 %v691, 32
        %v1810 = vpop.permute.xlu0 %1809
        %v1812 = vsel %vm692, %v1780, 0
        %v1815 = vsel %vm692, %v1782, 0
        %v1818 = vsel %vm692, %v1784, 0
        %v1821 = vsel %vm692, %v1786, 0
        %v1824 = vsel %vm692, %v1788, 0
        %v1827 = vsel %vm692, %v1790, 0
        %v1830 = vsel %vm692, %v1792, 0
        %v1833 = vsel %vm692, %v1794, 0
        %v1836 = vsel %vm692, %v1796, 0
        %v1839 = vsel %vm692, %v1798, 0
        %v1842 = vsel %vm692, %v1800, 0
        %v1845 = vsel %vm692, %v1802, 0
        %v1848 = vsel %vm692, %v1804, 0
        %v1851 = vsel %vm692, %v1806, 0
        %v1854 = vsel %vm692, %v1808, 0
        %v1857 = vsel %vm692, %v1810, 0
        %1859 = vmatpush.bf16.xpose.msra.mxu0 %v1857
        %1860 = vmatpush.bf16.xpose.msra.mxu0 %v1854
        %1861 = vmatpush.bf16.xpose.msra.mxu0 %v1851
        %1862 = vmatpush.bf16.xpose.msra.mxu0 %v1848
        %1863 = vmatpush.bf16.xpose.msra.mxu0 %v1845
        %1864 = vmatpush.bf16.xpose.msra.mxu0 %v1842
        %1865 = vmatpush.bf16.xpose.msra.mxu0 %v1839
        %1866 = vmatpush.bf16.xpose.msra.mxu0 %v1836
        %1867 = vmatmul.bf16.gmra.mxu0 %v1812
        %v1868 = vpop.f32.mrf.mxu0
        %v1869 = vadd.f32 0.0, %v1868
        %v1870 = vpop.f32.mrf.mxu0
        %v1871 = vadd.f32 0.0, %v1870
        %1872 = vmatmul.bf16.gmra.mxu0 %v1815
        %v1873 = vpop.f32.mrf.mxu0
        %v1874 = vadd.f32 0.0, %v1873
        %v1875 = vpop.f32.mrf.mxu0
        %v1876 = vadd.f32 0.0, %v1875
        %1877 = vmatmul.bf16.gmra.mxu0 %v1818
        %v1878 = vpop.f32.mrf.mxu0
        %v1879 = vadd.f32 0.0, %v1878
        %v1880 = vpop.f32.mrf.mxu0
        %v1881 = vadd.f32 0.0, %v1880
        %1882 = vmatmul.bf16.gmra.mxu0 %v1821
        %v1883 = vpop.f32.mrf.mxu0
        %v1884 = vadd.f32 0.0, %v1883
        %v1885 = vpop.f32.mrf.mxu0
        %v1886 = vadd.f32 0.0, %v1885
        %1887 = vmatmul.bf16.gmra.mxu0 %v1824
        %v1888 = vpop.f32.mrf.mxu0
        %v1889 = vadd.f32 0.0, %v1888
        %v1890 = vpop.f32.mrf.mxu0
        %v1891 = vadd.f32 0.0, %v1890
        %1892 = vmatmul.bf16.gmra.mxu0 %v1827
        %v1893 = vpop.f32.mrf.mxu0
        %v1894 = vadd.f32 0.0, %v1893
        %v1895 = vpop.f32.mrf.mxu0
        %v1896 = vadd.f32 0.0, %v1895
        %1897 = vmatmul.bf16.gmra.mxu0 %v1830
        %v1898 = vpop.f32.mrf.mxu0
        %v1899 = vadd.f32 0.0, %v1898
        %v1900 = vpop.f32.mrf.mxu0
        %v1901 = vadd.f32 0.0, %v1900
        %1902 = vmatmul.bf16.gmra.mxu0 %v1833
        %v1903 = vpop.f32.mrf.mxu0
        %v1904 = vadd.f32 0.0, %v1903
        %v1905 = vpop.f32.mrf.mxu0
        %v1906 = vadd.f32 0.0, %v1905
        %1907 = vdwg.mxu0
        %v1908 = vsel %vm596, %v1869, -1e+30
        %v1909 = vsel %vm597, %v1871, -1e+30
        %v1910 = vsel %vm598, %v1874, -1e+30
        %v1911 = vsel %vm599, %v1876, -1e+30
        %v1912 = vsel %vm600, %v1879, -1e+30
        %v1913 = vsel %vm601, %v1881, -1e+30
        %v1914 = vsel %vm602, %v1884, -1e+30
        %v1915 = vsel %vm603, %v1886, -1e+30
        %v1916 = vsel %vm604, %v1889, -1e+30
        %v1917 = vsel %vm605, %v1891, -1e+30
        %v1918 = vsel %vm606, %v1894, -1e+30
        %v1919 = vsel %vm607, %v1896, -1e+30
        %v1920 = vsel %vm608, %v1899, -1e+30
        %v1921 = vsel %vm609, %v1901, -1e+30
        %v1922 = vsel %vm610, %v1904, -1e+30
        %v1923 = vsel %vm611, %v1906, -1e+30
        %1924 = vmax.xlane.f32.xlu0 %v1908
        %v1925 = vpop.xlane.xlu0 %1924
        %1926 = vmax.xlane.f32.xlu0 %v1909
        %v1927 = vpop.xlane.xlu0 %1926
        %1928 = vmax.xlane.f32.xlu0 %v1910
        %v1929 = vpop.xlane.xlu0 %1928
        %1930 = vmax.xlane.f32.xlu0 %v1911
        %v1931 = vpop.xlane.xlu0 %1930
        %1932 = vmax.xlane.f32.xlu0 %v1912
        %v1933 = vpop.xlane.xlu0 %1932
        %1934 = vmax.xlane.f32.xlu0 %v1913
        %v1935 = vpop.xlane.xlu0 %1934
        %1936 = vmax.xlane.f32.xlu0 %v1914
        %v1937 = vpop.xlane.xlu0 %1936
        %1938 = vmax.xlane.f32.xlu0 %v1915
        %v1939 = vpop.xlane.xlu0 %1938
        %1940 = vmax.xlane.f32.xlu0 %v1916
        %v1941 = vpop.xlane.xlu0 %1940
        %1942 = vmax.xlane.f32.xlu0 %v1917
        %v1943 = vpop.xlane.xlu0 %1942
        %1944 = vmax.xlane.f32.xlu0 %v1918
        %v1945 = vpop.xlane.xlu0 %1944
        %1946 = vmax.xlane.f32.xlu0 %v1919
        %v1947 = vpop.xlane.xlu0 %1946
        %1948 = vmax.xlane.f32.xlu0 %v1920
        %v1949 = vpop.xlane.xlu0 %1948
        %1950 = vmax.xlane.f32.xlu0 %v1921
        %v1951 = vpop.xlane.xlu0 %1950
        %1952 = vmax.xlane.f32.xlu0 %v1922
        %v1953 = vpop.xlane.xlu0 %1952
        %1954 = vmax.xlane.f32.xlu0 %v1923
        %v1955 = vpop.xlane.xlu0 %1954
        %v1956 = vsub.f32 %v1908, %v1925
        %v1957 = vsub.f32 %v1909, %v1927
        %v1958 = vsub.f32 %v1910, %v1929
        %v1959 = vsub.f32 %v1911, %v1931
        %v1960 = vsub.f32 %v1912, %v1933
        %v1961 = vsub.f32 %v1913, %v1935
        %v1962 = vsub.f32 %v1914, %v1937
        %v1963 = vsub.f32 %v1915, %v1939
        %v1964 = vsub.f32 %v1916, %v1941
        %v1965 = vsub.f32 %v1917, %v1943
        %v1966 = vsub.f32 %v1918, %v1945
        %v1967 = vsub.f32 %v1919, %v1947
        %v1968 = vsub.f32 %v1920, %v1949
        %v1969 = vsub.f32 %v1921, %v1951
        %v1970 = vsub.f32 %v1922, %v1953
        %v1971 = vsub.f32 %v1923, %v1955
        %v1972 = vmul.f32 %v1956, 1.442695
        %v1973 = vpow.pop %v1972
        %v1974 = vmul.f32 %v1957, 1.442695
        %v1975 = vpow.pop %v1974
        %v1976 = vmul.f32 %v1958, 1.442695
        %v1977 = vpow.pop %v1976
        %v1978 = vmul.f32 %v1959, 1.442695
        %v1979 = vpow.pop %v1978
        %v1980 = vmul.f32 %v1960, 1.442695
        %v1981 = vpow.pop %v1980
        %v1982 = vmul.f32 %v1961, 1.442695
        %v1983 = vpow.pop %v1982
        %v1984 = vmul.f32 %v1962, 1.442695
        %v1985 = vpow.pop %v1984
        %v1986 = vmul.f32 %v1963, 1.442695
        %v1987 = vpow.pop %v1986
        %v1988 = vmul.f32 %v1964, 1.442695
        %v1989 = vpow.pop %v1988
        %v1990 = vmul.f32 %v1965, 1.442695
        %v1991 = vpow.pop %v1990
        %v1992 = vmul.f32 %v1966, 1.442695
        %v1993 = vpow.pop %v1992
        %v1994 = vmul.f32 %v1967, 1.442695
        %v1995 = vpow.pop %v1994
        %v1996 = vmul.f32 %v1968, 1.442695
        %v1997 = vpow.pop %v1996
        %v1998 = vmul.f32 %v1969, 1.442695
        %v1999 = vpow.pop %v1998
        %v2000 = vmul.f32 %v1970, 1.442695
        %v2001 = vpow.pop %v2000
        %v2002 = vmul.f32 %v1971, 1.442695
        %v2003 = vpow.pop %v2002
        %2004 = vadd.xlane.f32.xlu0 %v1973
        %v2005 = vpop.xlane.xlu0 %2004
        %2006 = vadd.xlane.f32.xlu0 %v1975
        %v2007 = vpop.xlane.xlu0 %2006
        %2008 = vadd.xlane.f32.xlu0 %v1977
        %v2009 = vpop.xlane.xlu0 %2008
        %2010 = vadd.xlane.f32.xlu0 %v1979
        %v2011 = vpop.xlane.xlu0 %2010
        %2012 = vadd.xlane.f32.xlu0 %v1981
        %v2013 = vpop.xlane.xlu0 %2012
        %2014 = vadd.xlane.f32.xlu0 %v1983
        %v2015 = vpop.xlane.xlu0 %2014
        %2016 = vadd.xlane.f32.xlu0 %v1985
        %v2017 = vpop.xlane.xlu0 %2016
        %2018 = vadd.xlane.f32.xlu0 %v1987
        %v2019 = vpop.xlane.xlu0 %2018
        %2020 = vadd.xlane.f32.xlu0 %v1989
        %v2021 = vpop.xlane.xlu0 %2020
        %2022 = vadd.xlane.f32.xlu0 %v1991
        %v2023 = vpop.xlane.xlu0 %2022
        %2024 = vadd.xlane.f32.xlu0 %v1993
        %v2025 = vpop.xlane.xlu0 %2024
        %2026 = vadd.xlane.f32.xlu0 %v1995
        %v2027 = vpop.xlane.xlu0 %2026
        %2028 = vadd.xlane.f32.xlu0 %v1997
        %v2029 = vpop.xlane.xlu0 %2028
        %2030 = vadd.xlane.f32.xlu0 %v1999
        %v2031 = vpop.xlane.xlu0 %2030
        %2032 = vadd.xlane.f32.xlu0 %v2001
        %v2033 = vpop.xlane.xlu0 %2032
        %2034 = vadd.xlane.f32.xlu0 %v2003
        %v2035 = vpop.xlane.xlu0 %2034
        %v2036 = vrcp.pop %v2005
        %v2037 = vrcp.pop %v2007
        %v2038 = vrcp.pop %v2009
        %v2039 = vrcp.pop %v2011
        %v2040 = vrcp.pop %v2013
        %v2041 = vrcp.pop %v2015
        %v2042 = vrcp.pop %v2017
        %v2043 = vrcp.pop %v2019
        %v2044 = vrcp.pop %v2021
        %v2045 = vrcp.pop %v2023
        %v2046 = vrcp.pop %v2025
        %v2047 = vrcp.pop %v2027
        %v2048 = vrcp.pop %v2029
        %v2049 = vrcp.pop %v2031
        %v2050 = vrcp.pop %v2033
        %v2051 = vrcp.pop %v2035
        %v2052 = vmul.f32 %v1973, %v2036
        %v2053 = vmul.f32 %v1975, %v2037
        %v2054 = vmul.f32 %v1977, %v2038
        %v2055 = vmul.f32 %v1979, %v2039
        %v2056 = vmul.f32 %v1981, %v2040
        %v2057 = vmul.f32 %v1983, %v2041
        %v2058 = vmul.f32 %v1985, %v2042
        %v2059 = vmul.f32 %v1987, %v2043
        %v2060 = vmul.f32 %v1989, %v2044
        %v2061 = vmul.f32 %v1991, %v2045
        %v2062 = vmul.f32 %v1993, %v2046
        %v2063 = vmul.f32 %v1995, %v2047
        %v2064 = vmul.f32 %v1997, %v2048
        %v2065 = vmul.f32 %v1999, %v2049
        %v2066 = vmul.f32 %v2001, %v2050
        %v2067 = vmul.f32 %v2003, %v2051
        %v2068 = vpack.c.bf16 %v2053, %v2052
        %v2069 = vpack.c.bf16 %v2055, %v2054
        %v2070 = vpack.c.bf16 %v2057, %v2056
        %v2071 = vpack.c.bf16 %v2059, %v2058
        %v2072 = vpack.c.bf16 %v2061, %v2060
        %v2073 = vpack.c.bf16 %v2063, %v2062
        %v2074 = vpack.c.bf16 %v2065, %v2064
        %v2075 = vpack.c.bf16 %v2067, %v2066
        %2076 = vrot.lane.b32.xlu0 %v958, 32
        %v2077 = vpop.permute.xlu0 %2076
        %2078 = vrot.lane.b32.xlu0 %v959, 32
        %v2079 = vpop.permute.xlu0 %2078
        %2080 = vrot.lane.b32.xlu0 %v960, 32
        %v2081 = vpop.permute.xlu0 %2080
        %2082 = vrot.lane.b32.xlu0 %v961, 32
        %v2083 = vpop.permute.xlu0 %2082
        %2084 = vrot.lane.b32.xlu0 %v962, 32
        %v2085 = vpop.permute.xlu0 %2084
        %2086 = vrot.lane.b32.xlu0 %v963, 32
        %v2087 = vpop.permute.xlu0 %2086
        %2088 = vrot.lane.b32.xlu0 %v964, 32
        %v2089 = vpop.permute.xlu0 %2088
        %2090 = vrot.lane.b32.xlu0 %v965, 32
        %v2091 = vpop.permute.xlu0 %2090
        %2100 = vmatpush.bf16.msra.mxu0 %v2091
        %2101 = vmatpush.bf16.msra.mxu0 %v2089
        %2102 = vmatpush.bf16.msra.mxu0 %v2087
        %2103 = vmatpush.bf16.msra.mxu0 %v2085
        %2104 = vmatpush.bf16.msra.mxu0 %v2083
        %2105 = vmatpush.bf16.msra.mxu0 %v2081
        %2106 = vmatpush.bf16.msra.mxu0 %v2079
        %2107 = vmatpush.bf16.msra.mxu0 %v2077
        %2108 = vmatmul.bf16.gmra.mxu0 %v2068
        %v2109 = vpop.f32.mrf.mxu0
        %v2110 = vadd.f32 0.0, %v2109
        %v2111 = vpop.f32.mrf.mxu0
        %v2112 = vadd.f32 0.0, %v2111
        %2113 = vmatmul.bf16.gmra.mxu0 %v2069
        %v2114 = vpop.f32.mrf.mxu0
        %v2115 = vadd.f32 0.0, %v2114
        %v2116 = vpop.f32.mrf.mxu0
        %v2117 = vadd.f32 0.0, %v2116
        %2118 = vmatmul.bf16.gmra.mxu0 %v2070
        %v2119 = vpop.f32.mrf.mxu0
        %v2120 = vadd.f32 0.0, %v2119
        %v2121 = vpop.f32.mrf.mxu0
        %v2122 = vadd.f32 0.0, %v2121
        %2123 = vmatmul.bf16.gmra.mxu0 %v2071
        %v2124 = vpop.f32.mrf.mxu0
        %v2125 = vadd.f32 0.0, %v2124
        %v2126 = vpop.f32.mrf.mxu0
        %v2127 = vadd.f32 0.0, %v2126
        %2128 = vmatmul.bf16.gmra.mxu0 %v2072
        %v2129 = vpop.f32.mrf.mxu0
        %v2130 = vadd.f32 0.0, %v2129
        %v2131 = vpop.f32.mrf.mxu0
        %v2132 = vadd.f32 0.0, %v2131
        %2133 = vmatmul.bf16.gmra.mxu0 %v2073
        %v2134 = vpop.f32.mrf.mxu0
        %v2135 = vadd.f32 0.0, %v2134
        %v2136 = vpop.f32.mrf.mxu0
        %v2137 = vadd.f32 0.0, %v2136
        %2138 = vmatmul.bf16.gmra.mxu0 %v2074
        %v2139 = vpop.f32.mrf.mxu0
        %v2140 = vadd.f32 0.0, %v2139
        %v2141 = vpop.f32.mrf.mxu0
        %v2142 = vadd.f32 0.0, %v2141
        %2143 = vmatmul.bf16.gmra.mxu0 %v2075
        %v2144 = vpop.f32.mrf.mxu0
        %v2145 = vadd.f32 0.0, %v2144
        %v2146 = vpop.f32.mrf.mxu0
        %v2147 = vadd.f32 0.0, %v2146
        %2148 = vdwg.mxu0
        %2165 = vrot.lane.b32.xlu0 %v1370, 32
        %v2166 = vpop.permute.xlu0 %2165
        %2167 = vrot.lane.b32.xlu0 %v1372, 32
        %v2168 = vpop.permute.xlu0 %2167
        %2169 = vrot.lane.b32.xlu0 %v1375, 32
        %v2170 = vpop.permute.xlu0 %2169
        %2171 = vrot.lane.b32.xlu0 %v1377, 32
        %v2172 = vpop.permute.xlu0 %2171
        %2173 = vrot.lane.b32.xlu0 %v1380, 32
        %v2174 = vpop.permute.xlu0 %2173
        %2175 = vrot.lane.b32.xlu0 %v1382, 32
        %v2176 = vpop.permute.xlu0 %2175
        %2177 = vrot.lane.b32.xlu0 %v1385, 32
        %v2178 = vpop.permute.xlu0 %2177
        %2179 = vrot.lane.b32.xlu0 %v1387, 32
        %v2180 = vpop.permute.xlu0 %2179
        %2181 = vrot.lane.b32.xlu0 %v1390, 32
        %v2182 = vpop.permute.xlu0 %2181
        %2183 = vrot.lane.b32.xlu0 %v1392, 32
        %v2184 = vpop.permute.xlu0 %2183
        %2185 = vrot.lane.b32.xlu0 %v1395, 32
        %v2186 = vpop.permute.xlu0 %2185
        %2187 = vrot.lane.b32.xlu0 %v1397, 32
        %v2188 = vpop.permute.xlu0 %2187
        %2189 = vrot.lane.b32.xlu0 %v1400, 32
        %v2190 = vpop.permute.xlu0 %2189
        %2191 = vrot.lane.b32.xlu0 %v1402, 32
        %v2192 = vpop.permute.xlu0 %2191
        %2193 = vrot.lane.b32.xlu0 %v1405, 32
        %v2194 = vpop.permute.xlu0 %2193
        %2195 = vrot.lane.b32.xlu0 %v1407, 32
        %v2196 = vpop.permute.xlu0 %2195
        %2229 = vrot.lane.b32.xlu0 %v1740, 64
        %v2230 = vpop.permute.xlu0 %2229
        %2231 = vrot.lane.b32.xlu0 %v1742, 64
        %v2232 = vpop.permute.xlu0 %2231
        %2233 = vrot.lane.b32.xlu0 %v1745, 64
        %v2234 = vpop.permute.xlu0 %2233
        %2235 = vrot.lane.b32.xlu0 %v1747, 64
        %v2236 = vpop.permute.xlu0 %2235
        %2237 = vrot.lane.b32.xlu0 %v1750, 64
        %v2238 = vpop.permute.xlu0 %2237
        %2239 = vrot.lane.b32.xlu0 %v1752, 64
        %v2240 = vpop.permute.xlu0 %2239
        %2241 = vrot.lane.b32.xlu0 %v1755, 64
        %v2242 = vpop.permute.xlu0 %2241
        %2243 = vrot.lane.b32.xlu0 %v1757, 64
        %v2244 = vpop.permute.xlu0 %2243
        %2245 = vrot.lane.b32.xlu0 %v1760, 64
        %v2246 = vpop.permute.xlu0 %2245
        %2247 = vrot.lane.b32.xlu0 %v1762, 64
        %v2248 = vpop.permute.xlu0 %2247
        %2249 = vrot.lane.b32.xlu0 %v1765, 64
        %v2250 = vpop.permute.xlu0 %2249
        %2251 = vrot.lane.b32.xlu0 %v1767, 64
        %v2252 = vpop.permute.xlu0 %2251
        %2253 = vrot.lane.b32.xlu0 %v1770, 64
        %v2254 = vpop.permute.xlu0 %2253
        %2255 = vrot.lane.b32.xlu0 %v1772, 64
        %v2256 = vpop.permute.xlu0 %2255
        %2257 = vrot.lane.b32.xlu0 %v1775, 64
        %v2258 = vpop.permute.xlu0 %2257
        %2259 = vrot.lane.b32.xlu0 %v1777, 64
        %v2260 = vpop.permute.xlu0 %2259
        %2293 = vrot.lane.b32.xlu0 %v2110, 96
        %v2294 = vpop.permute.xlu0 %2293
        %2295 = vrot.lane.b32.xlu0 %v2112, 96
        %v2296 = vpop.permute.xlu0 %2295
        %2297 = vrot.lane.b32.xlu0 %v2115, 96
        %v2298 = vpop.permute.xlu0 %2297
        %2299 = vrot.lane.b32.xlu0 %v2117, 96
        %v2300 = vpop.permute.xlu0 %2299
        %2301 = vrot.lane.b32.xlu0 %v2120, 96
        %v2302 = vpop.permute.xlu0 %2301
        %2303 = vrot.lane.b32.xlu0 %v2122, 96
        %v2304 = vpop.permute.xlu0 %2303
        %2305 = vrot.lane.b32.xlu0 %v2125, 96
        %v2306 = vpop.permute.xlu0 %2305
        %2307 = vrot.lane.b32.xlu0 %v2127, 96
        %v2308 = vpop.permute.xlu0 %2307
        %2309 = vrot.lane.b32.xlu0 %v2130, 96
        %v2310 = vpop.permute.xlu0 %2309
        %2311 = vrot.lane.b32.xlu0 %v2132, 96
        %v2312 = vpop.permute.xlu0 %2311
        %2313 = vrot.lane.b32.xlu0 %v2135, 96
        %v2314 = vpop.permute.xlu0 %2313
        %2315 = vrot.lane.b32.xlu0 %v2137, 96
        %v2316 = vpop.permute.xlu0 %2315
        %2317 = vrot.lane.b32.xlu0 %v2140, 96
        %v2318 = vpop.permute.xlu0 %2317
        %2319 = vrot.lane.b32.xlu0 %v2142, 96
        %v2320 = vpop.permute.xlu0 %2319
        %2321 = vrot.lane.b32.xlu0 %v2145, 96
        %v2322 = vpop.permute.xlu0 %2321
        %2323 = vrot.lane.b32.xlu0 %v2147, 96
        %v2324 = vpop.permute.xlu0 %2323
        %v2341 = vsel %vm692, %v976, %v2166
        %v2342 = vsel %vm692, %v978, %v2168
        %v2343 = vsel %vm692, %v981, %v2170
        %v2344 = vsel %vm692, %v983, %v2172
        %v2345 = vsel %vm692, %v986, %v2174
        %v2346 = vsel %vm692, %v988, %v2176
        %v2347 = vsel %vm692, %v991, %v2178
        %v2348 = vsel %vm692, %v993, %v2180
        %v2349 = vsel %vm692, %v996, %v2182
        %v2350 = vsel %vm692, %v998, %v2184
        %v2351 = vsel %vm692, %v1001, %v2186
        %v2352 = vsel %vm692, %v1003, %v2188
        %v2353 = vsel %vm692, %v1006, %v2190
        %v2354 = vsel %vm692, %v1008, %v2192
        %v2355 = vsel %vm692, %v1011, %v2194
        %v2356 = vsel %vm692, %v1013, %v2196
        %vm2357 = vcmask 523264
        %v2358 = vsel %vm2357, %v2341, %v2230
        %v2359 = vsel %vm2357, %v2342, %v2232
        %v2360 = vsel %vm2357, %v2343, %v2234
        %v2361 = vsel %vm2357, %v2344, %v2236
        %v2362 = vsel %vm2357, %v2345, %v2238
        %v2363 = vsel %vm2357, %v2346, %v2240
        %v2364 = vsel %vm2357, %v2347, %v2242
        %v2365 = vsel %vm2357, %v2348, %v2244
        %v2366 = vsel %vm2357, %v2349, %v2246
        %v2367 = vsel %vm2357, %v2350, %v2248
        %v2368 = vsel %vm2357, %v2351, %v2250
        %v2369 = vsel %vm2357, %v2352, %v2252
        %v2370 = vsel %vm2357, %v2353, %v2254
        %v2371 = vsel %vm2357, %v2354, %v2256
        %v2372 = vsel %vm2357, %v2355, %v2258
        %v2373 = vsel %vm2357, %v2356, %v2260
        %vm2374 = vcmask 785408
        %v2375 = vsel %vm2374, %v2358, %v2294
        %v2376 = vsel %vm2374, %v2359, %v2296
        %v2377 = vsel %vm2374, %v2360, %v2298
        %v2378 = vsel %vm2374, %v2361, %v2300
        %v2379 = vsel %vm2374, %v2362, %v2302
        %v2380 = vsel %vm2374, %v2363, %v2304
        %v2381 = vsel %vm2374, %v2364, %v2306
        %v2382 = vsel %vm2374, %v2365, %v2308
        %v2383 = vsel %vm2374, %v2366, %v2310
        %v2384 = vsel %vm2374, %v2367, %v2312
        %v2385 = vsel %vm2374, %v2368, %v2314
        %v2386 = vsel %vm2374, %v2369, %v2316
        %v2387 = vsel %vm2374, %v2370, %v2318
        %v2388 = vsel %vm2374, %v2371, %v2320
        %v2389 = vsel %vm2374, %v2372, %v2322
        %v2390 = vsel %vm2374, %v2373, %v2324
        %v2391 = vpack.c.bf16 %v2376, %v2375
        %v2392 = vpack.c.bf16 %v2378, %v2377
        %v2393 = vpack.c.bf16 %v2380, %v2379
        %v2394 = vpack.c.bf16 %v2382, %v2381
        %v2395 = vpack.c.bf16 %v2384, %v2383
        %v2396 = vpack.c.bf16 %v2386, %v2385
        %v2397 = vpack.c.bf16 %v2388, %v2387
        %v2398 = vpack.c.bf16 %v2390, %v2389
        %v2399 = vld [vmem:[#allocation8] sm:$0xff]
        %v2400 = vld [vmem:[#allocation8 + $0x8] sm:$0xff]
        %v2401 = vld [vmem:[#allocation8 + $0x10] sm:$0xff]
        %v2402 = vld [vmem:[#allocation8 + $0x18] sm:$0xff]
        %v2403 = vld [vmem:[#allocation8 + $0x20] sm:$0xff]
        %v2404 = vld [vmem:[#allocation8 + $0x28] sm:$0xff]
        %v2405 = vld [vmem:[#allocation8 + $0x30] sm:$0xff]
        %v2406 = vld [vmem:[#allocation8 + $0x38] sm:$0xff]
        %v2407 = vld [vmem:[#allocation8 + $0x40] sm:$0xff]
        %v2408 = vld [vmem:[#allocation8 + $0x48] sm:$0xff]
        %v2409 = vld [vmem:[#allocation8 + $0x50] sm:$0xff]
        %v2410 = vld [vmem:[#allocation8 + $0x58] sm:$0xff]
        %v2411 = vld [vmem:[#allocation8 + $0x60] sm:$0xff]
        %v2412 = vld [vmem:[#allocation8 + $0x68] sm:$0xff]
        %v2413 = vld [vmem:[#allocation8 + $0x70] sm:$0xff]
        %v2414 = vld [vmem:[#allocation8 + $0x78] sm:$0xff]
        %v2415 = vpack.c.bf16 %v2400, %v2399
        %v2416 = vpack.c.bf16 %v2402, %v2401
        %v2417 = vpack.c.bf16 %v2404, %v2403
        %v2418 = vpack.c.bf16 %v2406, %v2405
        %v2419 = vpack.c.bf16 %v2408, %v2407
        %v2420 = vpack.c.bf16 %v2410, %v2409
        %v2421 = vpack.c.bf16 %v2412, %v2411
        %v2422 = vpack.c.bf16 %v2414, %v2413
        %v2423 = vld [vmem:[%s4] sm:$0x1]
        %v2425 = vperm.slane %v2423, 0
        %2427 = vmatpush.bf16.msra.mxu0 %v2422
        %2428 = vmatpush.bf16.msra.mxu0 %v2421
        %2429 = vmatpush.bf16.msra.mxu0 %v2420
        %2430 = vmatpush.bf16.msra.mxu0 %v2419
        %2431 = vmatpush.bf16.msra.mxu0 %v2418
        %2432 = vmatpush.bf16.msra.mxu0 %v2417
        %2433 = vmatpush.bf16.msra.mxu0 %v2416
        %2434 = vmatpush.bf16.msra.mxu0 %v2415
        %2435 = vmatmul.bf16.gmra.mxu0 %v2391
        %v2436 = vpop.f32.mrf.mxu0
        %v2437 = vadd.f32 %v2425, %v2436
        %v2438 = vpop.f32.mrf.mxu0
        %v2439 = vadd.f32 %v2425, %v2438
        %2440 = vmatmul.bf16.gmra.mxu0 %v2392
        %v2441 = vpop.f32.mrf.mxu0
        %v2442 = vadd.f32 %v2425, %v2441
        %v2443 = vpop.f32.mrf.mxu0
        %v2444 = vadd.f32 %v2425, %v2443
        %2445 = vmatmul.bf16.gmra.mxu0 %v2393
        %v2446 = vpop.f32.mrf.mxu0
        %v2447 = vadd.f32 %v2425, %v2446
        %v2448 = vpop.f32.mrf.mxu0
        %v2449 = vadd.f32 %v2425, %v2448
        %2450 = vmatmul.bf16.gmra.mxu0 %v2394
        %v2451 = vpop.f32.mrf.mxu0
        %v2452 = vadd.f32 %v2425, %v2451
        %v2453 = vpop.f32.mrf.mxu0
        %v2454 = vadd.f32 %v2425, %v2453
        %2455 = vmatmul.bf16.gmra.mxu0 %v2395
        %v2456 = vpop.f32.mrf.mxu0
        %v2457 = vadd.f32 %v2425, %v2456
        %v2458 = vpop.f32.mrf.mxu0
        %v2459 = vadd.f32 %v2425, %v2458
        %2460 = vmatmul.bf16.gmra.mxu0 %v2396
        %v2461 = vpop.f32.mrf.mxu0
        %v2462 = vadd.f32 %v2425, %v2461
        %v2463 = vpop.f32.mrf.mxu0
        %v2464 = vadd.f32 %v2425, %v2463
        %2465 = vmatmul.bf16.gmra.mxu0 %v2397
        %v2466 = vpop.f32.mrf.mxu0
        %v2467 = vadd.f32 %v2425, %v2466
        %v2468 = vpop.f32.mrf.mxu0
        %v2469 = vadd.f32 %v2425, %v2468
        %2470 = vmatmul.bf16.gmra.mxu0 %v2398
        %v2471 = vpop.f32.mrf.mxu0
        %v2472 = vadd.f32 %v2425, %v2471
        %v2473 = vpop.f32.mrf.mxu0
        %v2474 = vadd.f32 %v2425, %v2473
        %2475 = vdwg.mxu0
        %2476 = vst [vmem:[%s277] sm:$0xff] %v2437
        %2477 = vst [vmem:[%s277 + $0x8] sm:$0xff] %v2439
        %2478 = vst [vmem:[%s277 + $0x10] sm:$0xff] %v2442
        %2479 = vst [vmem:[%s277 + $0x18] sm:$0xff] %v2444
        %2480 = vst [vmem:[%s277 + $0x20] sm:$0xff] %v2447
        %2481 = vst [vmem:[%s277 + $0x28] sm:$0xff] %v2449
        %2482 = vst [vmem:[%s277 + $0x30] sm:$0xff] %v2452
        %2483 = vst [vmem:[%s277 + $0x38] sm:$0xff] %v2454
        %2484 = vst [vmem:[%s277 + $0x40] sm:$0xff] %v2457
        %2485 = vst [vmem:[%s277 + $0x48] sm:$0xff] %v2459
        %2486 = vst [vmem:[%s277 + $0x50] sm:$0xff] %v2462
        %2487 = vst [vmem:[%s277 + $0x58] sm:$0xff] %v2464
        %2488 = vst [vmem:[%s277 + $0x60] sm:$0xff] %v2467
        %2489 = vst [vmem:[%s277 + $0x68] sm:$0xff] %v2469
        %2490 = vst [vmem:[%s277 + $0x70] sm:$0xff] %v2472
        %2491 = vst [vmem:[%s277 + $0x78] sm:$0xff] %v2474
        %s2492 = sand.u32 %s141, 1
        %s2493 = scalar_lea.sflag [#allocation5], %s2492
        %s2494 = sand.u32 %s141, 1
        %s2495 = smul.addr %s2494, 128
        %s2496 = scalar_lea.vmem [#allocation9], %s2495
        // Predicated region
        $region53: #{casual_self_attention.1} parent=39 // pred_check
          %p2497 = pneg %p151
        $region54: #{casual_self_attention.1} parent=39 // pred_check_branch
          %2499 = sbr.rel (%p2497) target = $region56
        $region55: #{casual_self_attention.1} parent=39 // pred_region
          %2501 = vsyncadd %s2493, 0
          %s2502 = smul.addr %s23, 16
          %s2503 = smul.addr %s2502, 8
          %s2504 = scalar_lea.hbm %s5, %s2503
          %s2505 = sshll.u32 %s2496, 4
          %s2506 = int_to_ptr.vmem [resolvable:$true] %s2505
          %s2507 = sshll.u32 %s2504, 4
          %s2508 = int_to_ptr.hbm [resolvable:$true] %s2507
          %2513 = dma.vmem_to_hbm [thread:$0]  %s2506, 2048, %s2508, %s2493, 128, 128, 8
        $region56: #{casual_self_attention.1} parent=39 // pred_fallthru
          _
      $region40: #{casual_self_attention.1} parent=5 // pred_fallthru
        _
      %p2514 = scmp.le.s32.totalorder 2, %s18
      // Predicated region
      $region57: #{casual_self_attention.1} parent=5 // pred_check
        %p2515 = pneg %p2514
      $region58: #{casual_self_attention.1} parent=5 // pred_check_branch
        %2517 = sbr.rel (%p2515) target = $region60
      $region59: #{casual_self_attention.1} parent=5 // pred_region
        %s2518 = ssub.s32 %s18, 2
        // Predicated region
        $region61: #{casual_self_attention.1} parent=59 // pred_check
          %p2519 = pneg %p157
        $region62: #{casual_self_attention.1} parent=59 // pred_check_branch
          %2521 = sbr.rel (%p2519) target = $region64
        $region63: #{casual_self_attention.1} parent=59 // pred_region
          %s2522 = sand.u32 %s142, 1
          %s2523 = scalar_lea.sflag [#allocation5], %s2522
          %s2524 = sand.u32 %s142, 1
          %s2525 = smul.addr %s2524, 128
          %s2526 = scalar_lea.vmem [#allocation9], %s2525
          %2528 = dma.done %s2523, 2048
        $region64: #{casual_self_attention.1} parent=59 // pred_fallthru
          _
      $region60: #{casual_self_attention.1} parent=5 // pred_fallthru
        _
    $region6: #{casual_self_attention.1} parent=1 // loop_footer
      %s22 = sadd.s32 1, %s18
    $region7: #{casual_self_attention.1} parent=1 // loop_footer_branch
      %17 = sbr.rel target = $region3
    $region8: #{casual_self_attention.1} parent=1 // loop_exit
      _
    %2529 = vsyncpa [#allocation4], 1
    %s2530 = scalar_lea.sflag [#allocation4], 1
    %2531 = vsyncpa %s2530, 1
    %2532 = vsyncpa [#allocation7], 1
    %2533 = vsyncpa [#allocation5], 1
    %s2534 = scalar_lea.sflag [#allocation5], 1
    %2535 = vsyncpa %s2534, 1

</llo_original>
